<compile_context>
chip_gen: v7x
topology: tpu7x:2x2x1
jax: 0.10.0
libtpu: 0.0.40
codegen_flags: <defaults>
</compile_context>

<pallas_src>
import numpy as np
import jax
import jax.numpy as jnp
from jax import lax
from jax.experimental import pallas as pl
from jax.experimental.pallas import tpu as pltpu

_NEG_LARGE = -1e30  # stand-in for -inf in the CE mask (exp-underflow safe; diag never masked)


def _round_up(x, m):
    return (x + m - 1) // m * m


def _pick_hw_chunk(hw):
    """Lane-chunk size for the conv/pool loop (multiple of 128 when possible)."""
    if hw <= 512:
        return hw
    for cand in (512, 256, 128):
        if hw % cand == 0:
            return cand
    return hw  # non-128-multiple spatial size: fall back to a single chunk


# -----------------------------------------------------------------------------
# Kernel 1: synthetic embedding backbone (1x1 conv -> ReLU -> pool -> FC).
# -----------------------------------------------------------------------------
def _make_embed_kernel(C, HW, HWC, HID):
    n_chunks = HW // HWC
    aligned = (HW % 128 == 0) and (HWC % 128 == 0)

    def kernel(x_ref, w1t_ref, w2_ref, b2_ref, feat_ref):
        TN = x_ref.shape[0]
        # Hoisted per-channel conv weights, sublane-arranged (1, HID, 1) so the
        # broadcast against (TN, 1, HWC) image slices is a one-time splat
        # (not re-emitted inside the chunk loop).
        w_cols = [jnp.reshape(w1t_ref[:, c:c + 1], (1, HID, 1)) for c in range(C)]

        def chunk_sum(k, acc):
            # acc: (TN, HID) f32 running sum over spatial positions of relu(conv)
            h = None
            for c in range(C):
                start = c * HW + k * HWC
                if aligned and not isinstance(start, int):
                    start = pl.multiple_of(start, 128)
                # bf16 is only the HBM transfer format; upcast right after the
                # load (f32 VALU is safe on v5e and matches the f32 reference).
                xc = x_ref[:, pl.ds(start, HWC)].astype(jnp.float32)   # (TN, HWC)
                term = xc[:, None, :] * w_cols[c]                       # (TN, HID, HWC)
                h = term if h is None else h + term                     # VPU FMA, tiny K=C
            h = jnp.maximum(h, 0.0)                                     # ReLU (VPU)
            return acc + jnp.sum(h, axis=-1)                            # lane reduce -> (TN, HID)

        acc0 = jnp.zeros((TN, HID), jnp.float32)
        if n_chunks == 1:
            pooled = chunk_sum(0, acc0)
        else:
            pooled = lax.fori_loop(0, n_chunks, chunk_sum, acc0,
                                   unroll=(n_chunks <= 8))

        # FC head.  The 1/HW pooling factor is pre-folded into w2 on the host;
        # output columns are zero-padded to 128 so this store is lane-dense.
        feat = jnp.dot(pooled, w2_ref[...],
                       preferred_element_type=jnp.float32) + b2_ref[...]
        feat_ref[...] = feat.astype(feat_ref.dtype)

    return kernel


# -----------------------------------------------------------------------------
# Kernel 2: micro contrastive cross-entropy on the padded feature slab.
# -----------------------------------------------------------------------------
def _make_ce_kernel(B, B_pad):
    def kernel(temp_ref, feat_ref, gcol_ref, grow_ref, loss_ref):
        inv_t = 1.0 / temp_ref[0]
        pos = feat_ref[pl.ds(0, B), :]             # (B, FPAD) positive features
        sk = feat_ref[pl.ds(B_pad, B), :]          # (B, FPAD) sketch features

        # Both similarity directions as MXU matmuls (no (B,B) XLU transpose);
        # 1/temperature applied to the (B,FPAD) operand, not the (B,B) result.
        # Padded feature columns are exactly zero, so the full-lane contraction
        # is safe.
        simA = lax.dot_general(sk * inv_t, pos, (((1,), (1,)), ((), ())),
                               preferred_element_type=jnp.float32)   # rows = sketches
        simB = lax.dot_general(pos * inv_t, sk, (((1,), (1,)), ((), ())),
                               preferred_element_type=jnp.float32)   # rows = positives

        # Name-equality mask built in-kernel from int group ids (symmetric by
        # construction -- required for the transposed-term reuse below).
        same = gcol_ref[...] == grow_ref[...]                        # (B, B)
        row = lax.broadcasted_iota(jnp.int32, (B, B), 0)
        col = lax.broadcasted_iota(jnp.int32, (B, B), 1)
        eye = row == col
        mask = jnp.where(jnp.logical_and(same, jnp.logical_not(eye)),
                         _NEG_LARGE, 0.0)
        mA = simA + mask
        mB = simB + mask      # == mA.T (mask symmetric)

        def lse_cols(m):      # stable LSE along axis 0 -> (1, B), lane-dense
            mx = jnp.max(m, axis=0, keepdims=True)
            return jnp.log(jnp.sum(jnp.exp(m - mx), axis=0, keepdims=True)) + mx

        # CE over rows of mA == LSE over columns of mB (and vice versa), so both
        # terms come out directly in the (1, B) lane-dense orientation.
        l1 = lse_cols(mB)                                            # term 1
        l2 = lse_cols(mA)                                            # term 2
        diag = jnp.sum(jnp.where(eye, simA, 0.0), axis=0, keepdims=True)  # simA[i,i]
        loss_ref[...] = 0.5 * (l1 + l2) - diag                       # (1, B) lane-dense store

    return kernel


# -----------------------------------------------------------------------------
# Wrapper
# -----------------------------------------------------------------------------
def fgsbir_fused_forward(positive_img, sketch_img, gids, params, temperature):
    """Returns (positive_feature (B,F), sketch_feature (B,F), loss (B,))."""
    w1, w2, b2 = params                        # (C, HID), (HID, F), (1, F)
    B, C, H, W = positive_img.shape
    HW = H * W
    CHW = C * HW
    HID, F = w2.shape
    FPAD = max(128, _round_up(F, 128))

    # ---- static tile selection ----
    HWC = _pick_hw_chunk(HW)
    TN = 128
    while TN > 8 and (TN * CHW * 2 * 2 > (24 << 20)         # bf16 x tile, double-buffered
                      or TN * HID * HWC * 4 > (8 << 20)):   # conv intermediate
        TN //= 2
    TN = min(TN, _round_up(B, 8))              # don't over-pad tiny batches (stays mult of 8)
    B_pad = _round_up(B, TN)
    N_pad = 2 * B_pad

    # ---- lane-dense (N_pad, C*HW) bf16 input: rows [0,B)=positive, [B_pad,B_pad+B)=sketch
    x = jnp.zeros((N_pad, CHW), jnp.bfloat16)
    x = x.at[:B].set(positive_img.reshape(B, CHW).astype(jnp.bfloat16))
    x = x.at[B_pad:B_pad + B].set(sketch_img.reshape(B, CHW).astype(jnp.bfloat16))

    w1t = jnp.transpose(w1).astype(jnp.float32)                        # (HID, C): HID on sublanes
    w2p = jnp.zeros((HID, FPAD), jnp.float32).at[:, :F].set(
        w2.astype(jnp.float32) / float(HW))                            # fold 1/HW pooling factor
    b2p = jnp.zeros((1, FPAD), jnp.float32).at[:, :F].set(b2.astype(jnp.float32))

    # ---- embedding kernel: batch-tiled grid, auto double-buffered, parallel ----
    embed_kernel = _make_embed_kernel(C, HW, HWC, HID)
    vmem_need = (2 * TN * CHW * 2 + 2 * TN * FPAD * 4
                 + 2 * TN * HID * HWC * 4
                 + (HID * C + HID * FPAD + FPAD) * 4 + (2 << 20))
    vmem_limit = int(min(max(vmem_need, 16 << 20), 64 << 20))
    embed_cost = pl.CostEstimate(
        flops=int(2 * N_pad * C * HID * HW + 2 * N_pad * HID * FPAD),
        transcendentals=0,
        bytes_accessed=int(N_pad * CHW * 2 + N_pad * FPAD * 4
                           + (HID * C + HID * FPAD + FPAD) * 4))

    feats = pl.pallas_call(
        embed_kernel,
        out_shape=jax.ShapeDtypeStruct((N_pad, FPAD), jnp.float32),
        grid=(N_pad // TN,),
        in_specs=[pl.BlockSpec((TN, CHW), lambda i: (i, 0)),   # lane-dense image tile
                  pl.BlockSpec((HID, C), lambda i: (0, 0)),    # conv weights (transposed)
                  pl.BlockSpec((HID, FPAD), lambda i: (0, 0)),  # FC weights (lane-padded)
                  pl.BlockSpec((1, FPAD), lambda i: (0, 0))],   # FC bias
        out_specs=pl.BlockSpec((TN, FPAD), lambda i: (i, 0)),
        compiler_params=pltpu.CompilerParams(
            dimension_semantics=("parallel",),   # batch tiles are independent (2 TCs on v7x)
            vmem_limit_bytes=vmem_limit),
        cost_estimate=embed_cost,
    )(x, w1t, w2p, b2p)

    # ---- micro CE kernel on the features ----
    gcol = gids.reshape(B, 1).astype(jnp.int32)
    grow = gids.reshape(1, B).astype(jnp.int32)
    ce_kernel = _make_ce_kernel(B, B_pad)
    ce_vmem = int(min(max(2 * N_pad * FPAD * 4 + (2 << 20), 16 << 20), 64 << 20))
    ce_cost = pl.CostEstimate(
        flops=int(4 * B * B * FPAD + 10 * B * B),
        transcendentals=int(2 * B * B),
        bytes_accessed=int(N_pad * FPAD * 4 + 3 * B * 4 + 4))

    loss = pl.pallas_call(
        ce_kernel,
        out_shape=jax.ShapeDtypeStruct((1, B), jnp.float32),
        in_specs=[pl.BlockSpec(memory_space=pltpu.SMEM),        # temperature (1,)
                  pl.BlockSpec((N_pad, FPAD), lambda: (0, 0)),  # features
                  pl.BlockSpec((B, 1), lambda: (0, 0)),         # group ids (column)
                  pl.BlockSpec((1, B), lambda: (0, 0))],        # group ids (row)
        out_specs=pl.BlockSpec((1, B), lambda: (0, 0)),
        compiler_params=pltpu.CompilerParams(vmem_limit_bytes=ce_vmem),
        cost_estimate=ce_cost,
    )(temperature, feats, gcol, grow)

    positive_feature = feats[:B, :F]
    sketch_feature = feats[B_pad:B_pad + B, :F]
    return positive_feature, sketch_feature, loss[0, :]


_fgsbir_fused_forward_jit = jax.jit(fgsbir_fused_forward)


class FGSBIRModelPallas:
    """JAX/Pallas port of FGSBIR_Model (cross_entropy loss path)."""

    def __init__(self, in_channels=4, hidden=32, feat_dim=32,
                 loss_type="cross_entropy", ce_temp=0.2, seed=0):
        self.loss_type = loss_type
        self.temperature = jnp.array([ce_temp], dtype=jnp.float32)      # registered buffer
        k1, k2, k3 = jax.random.split(jax.random.PRNGKey(seed), 3)
        w1 = jax.random.normal(k1, (in_channels, hidden), jnp.float32) / np.sqrt(in_channels)
        w2 = jax.random.normal(k2, (hidden, feat_dim), jnp.float32) / np.sqrt(hidden)
        b2 = 0.01 * jax.random.normal(k3, (1, feat_dim), jnp.float32)
        self.params = (w1, w2, b2)

    def forward(self, x_raw, n_strokes, scale, translate, seq_mask,
                positive_img, negative_img, sketch_img, positive_name,
                mask=None, **kwargs):
        if self.loss_type != "cross_entropy":
            # TODO(synk): triplet-margin branch not implemented (default path is cross_entropy)
            raise NotImplementedError("only loss_type='cross_entropy' is ported")

        # Host-side glue: string names -> int group ids (no (B,B) mask built on host).
        pn = np.asarray(positive_name)
        _, gid_np = np.unique(pn, return_inverse=True)
        gids = jnp.asarray(gid_np.astype(np.int32))

        positive_feature, sketch_feature, loss = _fgsbir_fused_forward_jit(
            positive_img, sketch_img, gids, self.params, self.temperature)

        return {
            "loss": loss,
            "pcoords_raw": x_raw,
            "pcoords_n_strokes": n_strokes,
            "pcoords_scale": scale,
            "pcoords_translate": translate,
            "pcoords_seq_mask": seq_mask,
            "sketch_feature": lax.stop_gradient(sketch_feature),
            "image_feature": lax.stop_gradient(positive_feature),
        }


if __name__ == "__main__":
    B, C, H, W = 4, 4, 16, 16
    key = jax.random.PRNGKey(0)
    kp, ks, kn, kr = jax.random.split(key, 4)
    positive_img = jax.random.normal(kp, (B, C, H, W), jnp.float32)
    sketch_img = jax.random.normal(ks, (B, C, H, W), jnp.float32)
    negative_img = jax.random.normal(kn, (B, C, H, W), jnp.float32)
    x_raw = jax.random.normal(kr, (B, 8, 5), jnp.float32)
    n_strokes = jnp.array([3, 4, 2, 5], dtype=jnp.int32)
    scale = jnp.ones((B,), jnp.float32)
    translate = jnp.zeros((B, 2), jnp.float32)
    seq_mask = jnp.ones((B, 8), jnp.float32)
    positive_name = ["cat_001", "dog_002", "cat_001", "bird_003"]   # duplicate -> mask exercised

    model = FGSBIRModelPallas(in_channels=C, hidden=32, feat_dim=32)
    out = model.forward(x_raw, n_strokes, scale, translate, seq_mask,
                        positive_img, negative_img, sketch_img, positive_name)
    jax.block_until_ready(out["loss"])

    # pure-JAX reference (same math as the synthetic backbone + PyTorch loss);
    # the reference uses the same bf16-rounded images as the kernel's HBM format.
    HIGH = lax.Precision.HIGHEST

    def ref_embed(img):
        w1, w2, b2 = model.params
        x32 = img.astype(jnp.bfloat16).astype(jnp.float32)
        xt = jnp.transpose(x32, (0, 2, 3, 1)).reshape(B, H * W, C)
        h = jnp.maximum(jnp.einsum("bpc,ch->bph", xt, w1, precision=HIGH), 0.0)
        return jnp.dot(jnp.mean(h, axis=1), w2, precision=HIGH) + b2

    pf = ref_embed(positive_img)
    sf = ref_embed(sketch_img)
    pn = np.array(positive_name)
    mb = pn[:, None] == pn[None, :]
    np.fill_diagonal(mb, False)
    mk = jnp.asarray(np.where(mb, _NEG_LARGE, 0.0).astype(np.float32))
    sim = jnp.dot(sf, pf.T, precision=HIGH) / model.temperature[0]

    def ce(logits):
        return jax.nn.logsumexp(logits, axis=-1) - jnp.diagonal(logits)

    ref_loss = 0.5 * (ce(sim + mk) + ce(sim.T + mk))
    np.testing.assert_allclose(np.asarray(out["image_feature"]), np.asarray(pf),
                               rtol=2e-3, atol=2e-3)
    np.testing.assert_allclose(np.asarray(out["sketch_feature"]), np.asarray(sf),
                               rtol=2e-3, atol=2e-3)
    np.testing.assert_allclose(np.asarray(out["loss"]), np.asarray(ref_loss),
                               rtol=2e-3, atol=2e-3)

    print("KERNEL_OK")
</pallas_src>

<mosaic_0001>
module attributes {stable_mosaic.version = 11 : i64} {
  func.func @kernel(%arg0: i32, %arg1: memref<8x1024xbf16, #tpu.memory_space<vmem>>, %arg2: memref<32x4xf32, #tpu.memory_space<vmem>>, %arg3: memref<32x128xf32, #tpu.memory_space<vmem>>, %arg4: memref<1x128xf32, #tpu.memory_space<vmem>>, %arg5: memref<8x128xf32, #tpu.memory_space<vmem>>) attributes {dimension_semantics = [#tpu.dimension_semantics<parallel>], iteration_bounds = array<i64: 2>, scalar_prefetch = 0 : i64, scratch_operands = 0 : i64, tpu.core_type = #tpu.core_type<tc>, window_params = [{transform_indices = @transform_0, window_bounds = array<i64: 8, 1024>}, {pipeline_mode = #tpu.pipeline_mode<synchronous>, transform_indices = @transform_1, window_bounds = array<i64: 32, 4>}, {pipeline_mode = #tpu.pipeline_mode<synchronous>, transform_indices = @transform_2, window_bounds = array<i64: 32, 128>}, {pipeline_mode = #tpu.pipeline_mode<synchronous>, transform_indices = @transform_3, window_bounds = array<i64: 1, 128>}, {transform_indices = @transform_4, window_bounds = array<i64: 8, 128>}]} {
    %c0 = arith.constant 0 : index
    %c0_0 = arith.constant 0 : index
    %0 = vector.load %arg2[%c0, %c0_0] : memref<32x4xf32, #tpu.memory_space<vmem>>, vector<32x1xf32>
    %1 = vector.shape_cast %0 : vector<32x1xf32> to vector<1x32x1xf32>
    %c0_1 = arith.constant 0 : index
    %c1 = arith.constant 1 : index
    %2 = vector.load %arg2[%c0_1, %c1] : memref<32x4xf32, #tpu.memory_space<vmem>>, vector<32x1xf32>
    %3 = vector.shape_cast %2 : vector<32x1xf32> to vector<1x32x1xf32>
    %c0_2 = arith.constant 0 : index
    %c2 = arith.constant 2 : index
    %4 = vector.load %arg2[%c0_2, %c2] : memref<32x4xf32, #tpu.memory_space<vmem>>, vector<32x1xf32>
    %5 = vector.shape_cast %4 : vector<32x1xf32> to vector<1x32x1xf32>
    %c0_3 = arith.constant 0 : index
    %c3 = arith.constant 3 : index
    %6 = vector.load %arg2[%c0_3, %c3] : memref<32x4xf32, #tpu.memory_space<vmem>>, vector<32x1xf32>
    %7 = vector.shape_cast %6 : vector<32x1xf32> to vector<1x32x1xf32>
    %cst = arith.constant 0.000000e+00 : f32
    %8 = vector.broadcast %cst : f32 to vector<8x32xf32>
    %c0_4 = arith.constant 0 : index
    %c0_5 = arith.constant 0 : index
    %9 = vector.load %arg1[%c0_4, %c0_5] : memref<8x1024xbf16, #tpu.memory_space<vmem>>, vector<8x256xbf16>
    %10 = arith.extf %9 : vector<8x256xbf16> to vector<8x256xf32>
    %11 = vector.shape_cast %10 : vector<8x256xf32> to vector<8x1x256xf32>
    %12 = vector.broadcast %11 : vector<8x1x256xf32> to vector<8x32x256xf32>
    %13 = vector.broadcast %1 : vector<1x32x1xf32> to vector<8x32x256xf32>
    %14 = arith.mulf %12, %13 : vector<8x32x256xf32>
    %c0_6 = arith.constant 0 : index
    %c256 = arith.constant 256 : index
    %15 = vector.load %arg1[%c0_6, %c256] : memref<8x1024xbf16, #tpu.memory_space<vmem>>, vector<8x256xbf16>
    %16 = arith.extf %15 : vector<8x256xbf16> to vector<8x256xf32>
    %17 = vector.shape_cast %16 : vector<8x256xf32> to vector<8x1x256xf32>
    %18 = vector.broadcast %17 : vector<8x1x256xf32> to vector<8x32x256xf32>
    %19 = vector.broadcast %3 : vector<1x32x1xf32> to vector<8x32x256xf32>
    %20 = arith.mulf %18, %19 : vector<8x32x256xf32>
    %21 = arith.addf %14, %20 : vector<8x32x256xf32>
    %c0_7 = arith.constant 0 : index
    %c512 = arith.constant 512 : index
    %22 = vector.load %arg1[%c0_7, %c512] : memref<8x1024xbf16, #tpu.memory_space<vmem>>, vector<8x256xbf16>
    %23 = arith.extf %22 : vector<8x256xbf16> to vector<8x256xf32>
    %24 = vector.shape_cast %23 : vector<8x256xf32> to vector<8x1x256xf32>
    %25 = vector.broadcast %24 : vector<8x1x256xf32> to vector<8x32x256xf32>
    %26 = vector.broadcast %5 : vector<1x32x1xf32> to vector<8x32x256xf32>
    %27 = arith.mulf %25, %26 : vector<8x32x256xf32>
    %28 = arith.addf %21, %27 : vector<8x32x256xf32>
    %c0_8 = arith.constant 0 : index
    %c768 = arith.constant 768 : index
    %29 = vector.load %arg1[%c0_8, %c768] : memref<8x1024xbf16, #tpu.memory_space<vmem>>, vector<8x256xbf16>
    %30 = arith.extf %29 : vector<8x256xbf16> to vector<8x256xf32>
    %31 = vector.shape_cast %30 : vector<8x256xf32> to vector<8x1x256xf32>
    %32 = vector.broadcast %31 : vector<8x1x256xf32> to vector<8x32x256xf32>
    %33 = vector.broadcast %7 : vector<1x32x1xf32> to vector<8x32x256xf32>
    %34 = arith.mulf %32, %33 : vector<8x32x256xf32>
    %35 = arith.addf %28, %34 : vector<8x32x256xf32>
    %cst_9 = arith.constant 0.000000e+00 : f32
    %36 = vector.broadcast %cst_9 : f32 to vector<8x32x256xf32>
    %37 = arith.maximumf %35, %36 : vector<8x32x256xf32>
    %cst_10 = arith.constant dense<0.000000e+00> : vector<8x32xf32>
    %38 = vector.multi_reduction <add>, %37, %cst_10 [2] : vector<8x32x256xf32> to vector<8x32xf32>
    %39 = arith.addf %8, %38 : vector<8x32xf32>
    %c0_11 = arith.constant 0 : index
    %c0_12 = arith.constant 0 : index
    %40 = vector.load %arg3[%c0_11, %c0_12] : memref<32x128xf32, #tpu.memory_space<vmem>>, vector<32x128xf32>
    %cst_13 = arith.constant dense<0.000000e+00> : vector<8x128xf32>
    %41 = tpu.matmul %39, %40, %cst_13 {dimension_numbers = #tpu.dot_dimension_numbers<[1], [0], [0], [1], [0, 0, 1, 1], [], []>} : vector<8x32xf32>, vector<32x128xf32>, vector<8x128xf32> -> vector<8x128xf32>
    %c0_14 = arith.constant 0 : index
    %c0_15 = arith.constant 0 : index
    %42 = vector.load %arg4[%c0_14, %c0_15] : memref<1x128xf32, #tpu.memory_space<vmem>>, vector<1x128xf32>
    %43 = vector.broadcast %42 : vector<1x128xf32> to vector<8x128xf32>
    %44 = arith.addf %41, %43 : vector<8x128xf32>
    %c0_16 = arith.constant 0 : index
    %c0_17 = arith.constant 0 : index
    %45 = vector.load %arg5[%c0_16, %c0_17] : memref<8x128xf32, #tpu.memory_space<vmem>>, vector<8x128xf32>
    tpu.vector_store %arg5[%c0_16, %c0_17], %44 {strides = array<i32>} : memref<8x128xf32, #tpu.memory_space<vmem>>, vector<8x128xf32>,
    return
  }
  func.func @transform_0(%arg0: i32) -> (i32, i32) {
    %c0_i32 = arith.constant 0 : i32
    %c0_i32_0 = arith.constant 0 : i32
    return %arg0, %c0_i32 : i32, i32
  }
  func.func @transform_1(%arg0: i32) -> (i32, i32) {
    %c0_i32 = arith.constant 0 : i32
    %c0_i32_0 = arith.constant 0 : i32
    %c0_i32_1 = arith.constant 0 : i32
    return %c0_i32, %c0_i32_0 : i32, i32
  }
  func.func @transform_2(%arg0: i32) -> (i32, i32) {
    %c0_i32 = arith.constant 0 : i32
    %c0_i32_0 = arith.constant 0 : i32
    %c0_i32_1 = arith.constant 0 : i32
    return %c0_i32, %c0_i32_0 : i32, i32
  }
  func.func @transform_3(%arg0: i32) -> (i32, i32) {
    %c0_i32 = arith.constant 0 : i32
    %c0_i32_0 = arith.constant 0 : i32
    %c0_i32_1 = arith.constant 0 : i32
    return %c0_i32, %c0_i32_0 : i32, i32
  }
  func.func @transform_4(%arg0: i32) -> (i32, i32) {
    %c0_i32 = arith.constant 0 : i32
    %c0_i32_0 = arith.constant 0 : i32
    return %arg0, %c0_i32 : i32, i32
  }
}

module attributes {stable_mosaic.version = 11 : i64} {
  func.func @kernel(%arg0: memref<1xf32, #tpu.memory_space<smem>>, %arg1: memref<16x128xf32, #tpu.memory_space<vmem>>, %arg2: memref<4x1xi32, #tpu.memory_space<vmem>>, %arg3: memref<1x4xi32, #tpu.memory_space<vmem>>, %arg4: memref<1x4xf32, #tpu.memory_space<vmem>>) attributes {dimension_semantics = [], scalar_prefetch = 0 : i64, scratch_operands = 0 : i64, tpu.core_type = #tpu.core_type<tc>} {
    %c0 = arith.constant 0 : index
    %0 = memref.load %arg0[%c0] : memref<1xf32, #tpu.memory_space<smem>>
    %cst = arith.constant 1.000000e+00 : f32
    %1 = arith.divf %cst, %0 : f32
    %c0_0 = arith.constant 0 : index
    %c0_1 = arith.constant 0 : index
    %2 = vector.load %arg1[%c0_0, %c0_1] : memref<16x128xf32, #tpu.memory_space<vmem>>, vector<4x128xf32>
    %c8 = arith.constant 8 : index
    %c0_2 = arith.constant 0 : index
    %3 = vector.load %arg1[%c8, %c0_2] : memref<16x128xf32, #tpu.memory_space<vmem>>, vector<4x128xf32>
    %4 = vector.broadcast %1 : f32 to vector<4x128xf32>
    %5 = arith.mulf %3, %4 : vector<4x128xf32>
    %cst_3 = arith.constant dense<0.000000e+00> : vector<4x4xf32>
    %6 = tpu.matmul %5, %2, %cst_3 {dimension_numbers = #tpu.dot_dimension_numbers<[1], [1], [0], [0], [0, 0, 1, 0], [], []>} : vector<4x128xf32>, vector<4x128xf32>, vector<4x4xf32> -> vector<4x4xf32>
    %7 = vector.broadcast %1 : f32 to vector<4x128xf32>
    %8 = arith.mulf %2, %7 : vector<4x128xf32>
    %cst_4 = arith.constant dense<0.000000e+00> : vector<4x4xf32>
    %9 = tpu.matmul %8, %3, %cst_4 {dimension_numbers = #tpu.dot_dimension_numbers<[1], [1], [0], [0], [0, 0, 1, 0], [], []>} : vector<4x128xf32>, vector<4x128xf32>, vector<4x4xf32> -> vector<4x4xf32>
    %c0_5 = arith.constant 0 : index
    %c0_6 = arith.constant 0 : index
    %10 = vector.load %arg2[%c0_5, %c0_6] : memref<4x1xi32, #tpu.memory_space<vmem>>, vector<4x1xi32>
    %c0_7 = arith.constant 0 : index
    %c0_8 = arith.constant 0 : index
    %11 = vector.load %arg3[%c0_7, %c0_8] : memref<1x4xi32, #tpu.memory_space<vmem>>, vector<1x4xi32>
    %12 = vector.broadcast %10 : vector<4x1xi32> to vector<4x4xi32>
    %13 = vector.broadcast %11 : vector<1x4xi32> to vector<4x4xi32>
    %14 = arith.cmpi eq, %12, %13 : vector<4x4xi32>
    %15 = tpu.iota {dimensions = array<i32: 0>} : vector<4x4xi32>
    %16 = tpu.iota {dimensions = array<i32: 1>} : vector<4x4xi32>
    %17 = arith.cmpi eq, %15, %16 : vector<4x4xi32>
    %cst_9 = arith.constant dense<true> : vector<4x4xi1>
    %18 = arith.xori %17, %cst_9 : vector<4x4xi1>
    %19 = arith.andi %14, %18 : vector<4x4xi1>
    %cst_10 = arith.constant -1.000000e+30 : f32
    %cst_11 = arith.constant 0.000000e+00 : f32
    %20 = vector.broadcast %cst_10 : f32 to vector<4x4xf32>
    %21 = vector.broadcast %cst_11 : f32 to vector<4x4xf32>
    %22 = arith.select %19, %20, %21 : vector<4x4xi1>, vector<4x4xf32>
    %23 = arith.addf %6, %22 : vector<4x4xf32>
    %24 = arith.addf %9, %22 : vector<4x4xf32>
    %cst_12 = arith.constant dense<0xFF800000> : vector<4xf32>
    %25 = vector.multi_reduction <maximumf>, %24, %cst_12 [0] : vector<4x4xf32> to vector<4xf32>
    %26 = vector.shape_cast %25 : vector<4xf32> to vector<1x4xf32>
    %27 = vector.broadcast %26 : vector<1x4xf32> to vector<4x4xf32>
    %28 = arith.subf %24, %27 : vector<4x4xf32>
    %29 = math.exp %28 : vector<4x4xf32>
    %cst_13 = arith.constant dense<0.000000e+00> : vector<4xf32>
    %30 = vector.multi_reduction <add>, %29, %cst_13 [0] : vector<4x4xf32> to vector<4xf32>
    %31 = vector.shape_cast %30 : vector<4xf32> to vector<1x4xf32>
    %32 = math.log %31 : vector<1x4xf32>
    %33 = arith.addf %32, %26 : vector<1x4xf32>
    %cst_14 = arith.constant dense<0xFF800000> : vector<4xf32>
    %34 = vector.multi_reduction <maximumf>, %23, %cst_14 [0] : vector<4x4xf32> to vector<4xf32>
    %35 = vector.shape_cast %34 : vector<4xf32> to vector<1x4xf32>
    %36 = vector.broadcast %35 : vector<1x4xf32> to vector<4x4xf32>
    %37 = arith.subf %23, %36 : vector<4x4xf32>
    %38 = math.exp %37 : vector<4x4xf32>
    %cst_15 = arith.constant dense<0.000000e+00> : vector<4xf32>
    %39 = vector.multi_reduction <add>, %38, %cst_15 [0] : vector<4x4xf32> to vector<4xf32>
    %40 = vector.shape_cast %39 : vector<4xf32> to vector<1x4xf32>
    %41 = math.log %40 : vector<1x4xf32>
    %42 = arith.addf %41, %35 : vector<1x4xf32>
    %cst_16 = arith.constant 0.000000e+00 : f32
    %43 = vector.broadcast %cst_16 : f32 to vector<4x4xf32>
    %44 = arith.select %17, %6, %43 : vector<4x4xi1>, vector<4x4xf32>
    %cst_17 = arith.constant dense<0.000000e+00> : vector<4xf32>
    %45 = vector.multi_reduction <add>, %44, %cst_17 [0] : vector<4x4xf32> to vector<4xf32>
    %46 = vector.shape_cast %45 : vector<4xf32> to vector<1x4xf32>
    %47 = arith.addf %33, %42 : vector<1x4xf32>
    %cst_18 = arith.constant 5.000000e-01 : f32
    %48 = vector.broadcast %cst_18 : f32 to vector<1x4xf32>
    %49 = arith.mulf %48, %47 : vector<1x4xf32>
    %50 = arith.subf %49, %46 : vector<1x4xf32>
    %c0_19 = arith.constant 0 : index
    %c0_20 = arith.constant 0 : index
    %51 = vector.load %arg4[%c0_19, %c0_20] : memref<1x4xf32, #tpu.memory_space<vmem>>, vector<1x4xf32>
    tpu.vector_store %arg4[%c0_19, %c0_20], %50 {strides = array<i32>} : memref<1x4xf32, #tpu.memory_space<vmem>>, vector<1x4xf32>,
    return
  }
}

</mosaic_0001>

<llo_original>
// kernel: fgsbir_fused_forward.3
$region0: #{fgsbir_fused_forward.3}
  #allocation0 [shape = 'u32[]', space=smem, size = 0x4, offset = 0x4, fixed_abs, tag = 'smem constant byte address 0x4 - core index']
  #allocation1 [shape = 'u32[144,128]{1,0:T(1,128)}', space=vmem, size = 0x12000, scoped, tag = 'internal scratch']
  #allocation2 [shape = 'f32[1]{0:T(128)S(6)}', space=smem, size = 0x200, scoped, tag = 'scoped memory for fgsbir_fused_forward.3']
  %s0 = inlined_call_operand.<no memory space> [shape: f32[1], index: 0, kind: input, shape index: {}]
  %s1 = inlined_call_operand.vmem [shape: f32[16,128], index: 1, kind: input, shape index: {}]
  %s2 = inlined_call_operand.vmem [shape: s32[4,1], index: 2, kind: input, shape index: {}]
  %s3 = inlined_call_operand.vmem [shape: s32[1,4], index: 3, kind: input, shape index: {}]
  %s4 = inlined_call_operand.hbm [shape: f32[1,4], index: 4, kind: output, shape index: {}]
  %s5 = sld [smem:[#allocation0]]
  $region26: #{fgsbir_fused_forward.3} parent=0
    _
  %s7 = ssub.s32 1, %s5
  %s8 = scalar_select 0, %s7, %s5
  %9 = sst [smem:[#allocation2]] %s0
  $region1: #{fgsbir_fused_forward.3} parent=0
    #allocation3 [shape = 'u8[512]{0}', space=vmem, size = 0x400, scoped, tag = 'output window, operand 0, single buffered']
    #allocation4 [shape = 's32[1]{0}', space=sflag, size = 0x4, scoped, tag = 'scoped memory for fgsbir_fused_forward.3']
    %10 = vsyncpa [#allocation4], 0
    // Predicated region
    $region2: #{fgsbir_fused_forward.3} parent=1 // pred_check
      _
    $region3: #{fgsbir_fused_forward.3} parent=1 // pred_check_branch
      %12 = sbr.rel (0) target = $region5
    $region4: #{fgsbir_fused_forward.3} parent=1 // pred_region
      _
    $region5: #{fgsbir_fused_forward.3} parent=1 // pred_fallthru
      _
    // Predicated region
    $region6: #{fgsbir_fused_forward.3} parent=1 // pred_check
      _
    $region7: #{fgsbir_fused_forward.3} parent=1 // pred_check_branch
      %14 = sbr.rel (0) target = $region9
    $region8: #{fgsbir_fused_forward.3} parent=1 // pred_region
      _
    $region9: #{fgsbir_fused_forward.3} parent=1 // pred_fallthru
      _
    // Predicated region
    $region10: #{fgsbir_fused_forward.3} parent=1 // pred_check
      _
    $region11: #{fgsbir_fused_forward.3} parent=1 // pred_check_branch
      %16 = sbr.rel (0) target = $region13
    $region12: #{fgsbir_fused_forward.3} parent=1 // pred_region
      _
    $region13: #{fgsbir_fused_forward.3} parent=1 // pred_fallthru
      _
    // Predicated region
    $region14: #{fgsbir_fused_forward.3} parent=1 // pred_check
      _
    $region15: #{fgsbir_fused_forward.3} parent=1 // pred_check_branch
      %18 = sbr.rel (0) target = $region17
    $region16: #{fgsbir_fused_forward.3} parent=1 // pred_region
      _
    $region17: #{fgsbir_fused_forward.3} parent=1 // pred_fallthru
      _
    %s19 = sld [smem:[#allocation2]]
    %v20 = vstv %s19
    %v21 = vrcp.pop %v20
    %s22 = vtos %v21
    %v23 = vld [vmem:[%s1] sm:$0xf]
    %v24 = vld [vmem:[%s1 + $0x8] sm:$0xf]
    %v25 = vstv %s22
    %v26 = vmul.f32 %v24, %v25
    %27 = vmatprep.subr.mxu0 0.0
    %28 = vmatpush1.xpose.msra.mxu0 %v23
    %29 = vmatprep.subr.mxu0 0.0
    %30 = vmatpush1.xpose.msra.mxu0 0.0
    %31 = vmatprep.subr.mxu0 0.0
    %32 = vmatpush1.xpose.msra.mxu0 0.0
    %33 = vmatprep.subr.mxu0 0.0
    %34 = vmatpush1.xpose.msra.mxu0 0.0
    %35 = vmatprep.subr.mxu0 0.0
    %36 = vmatpush1.xpose.msra.mxu0 0.0
    %37 = vmatprep.subr.mxu0 0.0
    %38 = vmatpush1.xpose.msra.mxu0 0.0
    %39 = vmatprep.subr.mxu0 0.0
    %40 = vmatpush1.xpose.msra.mxu0 0.0
    %41 = vmatprep.subr.mxu0 0.0
    %42 = vmatpush1.xpose.msra.mxu0 0.0
    %43 = vmatprep.subr.mxu0 0.0
    %44 = vmatpush1.xpose.msra.mxu0 0.0
    %45 = vmatprep.subr.mxu0 0.0
    %46 = vmatpush1.xpose.msra.mxu0 0.0
    %47 = vmatprep.subr.mxu0 0.0
    %48 = vmatpush1.xpose.msra.mxu0 0.0
    %49 = vmatprep.subr.mxu0 0.0
    %50 = vmatpush1.xpose.msra.mxu0 0.0
    %51 = vmatprep.subr.mxu0 0.0
    %52 = vmatpush1.xpose.msra.mxu0 0.0
    %53 = vmatprep.subr.mxu0 0.0
    %54 = vmatpush1.xpose.msra.mxu0 0.0
    %55 = vmatprep.subr.mxu0 0.0
    %56 = vmatpush1.xpose.msra.mxu0 0.0
    %57 = vmatprep.subr.mxu0 0.0
    %58 = vmatpush1.xpose.msra.mxu0 0.0
    %59 = vmatprep.subr.mxu0 0.0
    %60 = vmatpush1.xpose.msra.mxu0 0.0
    %61 = vmatprep.subr.mxu0 0.0
    %62 = vmatpush1.xpose.msra.mxu0 0.0
    %63 = vmatprep.subr.mxu0 0.0
    %64 = vmatpush1.xpose.msra.mxu0 0.0
    %65 = vmatprep.subr.mxu0 0.0
    %66 = vmatpush1.xpose.msra.mxu0 0.0
    %67 = vmatprep.subr.mxu0 0.0
    %68 = vmatpush1.xpose.msra.mxu0 0.0
    %69 = vmatprep.subr.mxu0 0.0
    %70 = vmatpush1.xpose.msra.mxu0 0.0
    %71 = vmatprep.subr.mxu0 0.0
    %72 = vmatpush1.xpose.msra.mxu0 0.0
    %73 = vmatprep.subr.mxu0 0.0
    %74 = vmatpush1.xpose.msra.mxu0 0.0
    %75 = vmatprep.subr.mxu0 0.0
    %76 = vmatpush1.xpose.msra.mxu0 0.0
    %77 = vmatprep.subr.mxu0 0.0
    %78 = vmatpush1.xpose.msra.mxu0 0.0
    %79 = vmatprep.subr.mxu0 0.0
    %80 = vmatpush1.xpose.msra.mxu0 0.0
    %81 = vmatprep.subr.mxu0 0.0
    %82 = vmatpush1.xpose.msra.mxu0 0.0
    %83 = vmatprep.subr.mxu0 0.0
    %84 = vmatpush1.xpose.msra.mxu0 0.0
    %85 = vmatprep.subr.mxu0 0.0
    %86 = vmatpush1.xpose.msra.mxu0 0.0
    %87 = vmatprep.subr.mxu0 0.0
    %88 = vmatpush1.xpose.msra.mxu0 0.0
    %89 = vmatprep.subr.mxu0 0.0
    %90 = vmatpush1.xpose.msra.mxu0 0.0
    %91 = vmatprep.mubr.f32.mxu0 0.0
    %92 = vmatmul.mubr.f32.gmra.mrb[0].mxu0 %v26
    %v93 = vpop.f32.mrb[0].mxu0
    %v94 = vadd.f32 0.0, %v93
    %v95 = vpop.f32.mrb[0].mxu0
    %96 = vdwg.mxu0
    %v97 = vmul.f32 %v23, %v25
    %v98 = vld [vmem:[%s2] sm:$0xf]
    %v99 = vld [vmem:[%s3] sm:$0x1]
    %100 = vset.pattern.permute.xlu0 0
    %101 = vperm.xlu0 %100, %v98
    %v102 = vpop.permute.xlu0 %101
    %v103 = vlaneseq
    %v104 = vshrl.u32 %v103, 7
    %v105 = vsub.s32 0, %v104
    %v106 = vrot.slane %v99, %v105
    %vm107 = vcmp.eq.s32.totalorder %v102, %v106
    %v108 = vlaneseq
    %v109 = vshrl.u32 %v108, 7
    %v110 = vlaneseq
    %v111 = vand.u32 %v110, 127
    %vm112 = vcmp.eq.s32.totalorder %v109, %v111
    %vm113 = vmxor %vm112, 1
    %vm114 = vmand %vm107, %vm113
    %v115 = vsel %vm114, -1e+30, 0.0
    %v116 = vadd.f32 %v94, %v115
    %117 = vmatprep.subr.mxu0 0.0
    %118 = vmatpush1.xpose.msra.mxu0 %v24
    %119 = vmatprep.subr.mxu0 0.0
    %120 = vmatpush1.xpose.msra.mxu0 0.0
    %121 = vmatprep.subr.mxu0 0.0
    %122 = vmatpush1.xpose.msra.mxu0 0.0
    %123 = vmatprep.subr.mxu0 0.0
    %124 = vmatpush1.xpose.msra.mxu0 0.0
    %125 = vmatprep.subr.mxu0 0.0
    %126 = vmatpush1.xpose.msra.mxu0 0.0
    %127 = vmatprep.subr.mxu0 0.0
    %128 = vmatpush1.xpose.msra.mxu0 0.0
    %129 = vmatprep.subr.mxu0 0.0
    %130 = vmatpush1.xpose.msra.mxu0 0.0
    %131 = vmatprep.subr.mxu0 0.0
    %132 = vmatpush1.xpose.msra.mxu0 0.0
    %133 = vmatprep.subr.mxu0 0.0
    %134 = vmatpush1.xpose.msra.mxu0 0.0
    %135 = vmatprep.subr.mxu0 0.0
    %136 = vmatpush1.xpose.msra.mxu0 0.0
    %137 = vmatprep.subr.mxu0 0.0
    %138 = vmatpush1.xpose.msra.mxu0 0.0
    %139 = vmatprep.subr.mxu0 0.0
    %140 = vmatpush1.xpose.msra.mxu0 0.0
    %141 = vmatprep.subr.mxu0 0.0
    %142 = vmatpush1.xpose.msra.mxu0 0.0
    %143 = vmatprep.subr.mxu0 0.0
    %144 = vmatpush1.xpose.msra.mxu0 0.0
    %145 = vmatprep.subr.mxu0 0.0
    %146 = vmatpush1.xpose.msra.mxu0 0.0
    %147 = vmatprep.subr.mxu0 0.0
    %148 = vmatpush1.xpose.msra.mxu0 0.0
    %149 = vmatprep.subr.mxu0 0.0
    %150 = vmatpush1.xpose.msra.mxu0 0.0
    %151 = vmatprep.subr.mxu0 0.0
    %152 = vmatpush1.xpose.msra.mxu0 0.0
    %153 = vmatprep.subr.mxu0 0.0
    %154 = vmatpush1.xpose.msra.mxu0 0.0
    %155 = vmatprep.subr.mxu0 0.0
    %156 = vmatpush1.xpose.msra.mxu0 0.0
    %157 = vmatprep.subr.mxu0 0.0
    %158 = vmatpush1.xpose.msra.mxu0 0.0
    %159 = vmatprep.subr.mxu0 0.0
    %160 = vmatpush1.xpose.msra.mxu0 0.0
    %161 = vmatprep.subr.mxu0 0.0
    %162 = vmatpush1.xpose.msra.mxu0 0.0
    %163 = vmatprep.subr.mxu0 0.0
    %164 = vmatpush1.xpose.msra.mxu0 0.0
    %165 = vmatprep.subr.mxu0 0.0
    %166 = vmatpush1.xpose.msra.mxu0 0.0
    %167 = vmatprep.subr.mxu0 0.0
    %168 = vmatpush1.xpose.msra.mxu0 0.0
    %169 = vmatprep.subr.mxu0 0.0
    %170 = vmatpush1.xpose.msra.mxu0 0.0
    %171 = vmatprep.subr.mxu0 0.0
    %172 = vmatpush1.xpose.msra.mxu0 0.0
    %173 = vmatprep.subr.mxu0 0.0
    %174 = vmatpush1.xpose.msra.mxu0 0.0
    %175 = vmatprep.subr.mxu0 0.0
    %176 = vmatpush1.xpose.msra.mxu0 0.0
    %177 = vmatprep.subr.mxu0 0.0
    %178 = vmatpush1.xpose.msra.mxu0 0.0
    %179 = vmatprep.subr.mxu0 0.0
    %180 = vmatpush1.xpose.msra.mxu0 0.0
    %181 = vmatprep.mubr.f32.mxu0 0.0
    %182 = vmatmul.mubr.f32.gmra.mrb[0].mxu0 %v97
    %v183 = vpop.f32.mrb[0].mxu0
    %v184 = vadd.f32 %v115, %v183
    %v185 = vpop.f32.mrb[0].mxu0
    %186 = vdwg.mxu0
    %vm187 = vcmask 27648
    %v188 = vsel %vm187, %v184, -inf
    %v189 = vrot.slane %v188, 4
    %v190 = vmax.f32 %v188, %v189
    %v191 = vrot.slane %v190, 2
    %v192 = vmax.f32 %v190, %v191
    %v193 = vrot.slane %v192, 1
    %v194 = vmax.f32 %v192, %v193
    %v195 = vsub.f32 %v184, %v194
    %v196 = vmul.f32 %v195, 1.442695
    %v197 = vpow.pop %v196
    %v198 = vsel %vm187, %v197, 0.0
    %v199 = vrot.slane %v198, 4
    %v200 = vadd.f32 %v198, %v199
    %v201 = vrot.slane %v200, 2
    %v202 = vadd.f32 %v200, %v201
    %v203 = vrot.slane %v202, 1
    %v204 = vadd.f32 %v202, %v203
    %v205 = vlog2.pop %v204
    %v206 = vmul.f32 %v205, 0.6931472
    %v207 = vadd.f32 %v206, %v194
    %v208 = vsel %vm187, %v116, -inf
    %v209 = vrot.slane %v208, 4
    %v210 = vmax.f32 %v208, %v209
    %v211 = vrot.slane %v210, 2
    %v212 = vmax.f32 %v210, %v211
    %v213 = vrot.slane %v212, 1
    %v214 = vmax.f32 %v212, %v213
    %v215 = vsub.f32 %v116, %v214
    %v216 = vmul.f32 %v215, 1.442695
    %v217 = vpow.pop %v216
    %v218 = vsel %vm187, %v217, 0.0
    %v219 = vrot.slane %v218, 4
    %v220 = vadd.f32 %v218, %v219
    %v221 = vrot.slane %v220, 2
    %v222 = vadd.f32 %v220, %v221
    %v223 = vrot.slane %v222, 1
    %v224 = vadd.f32 %v222, %v223
    %v225 = vlog2.pop %v224
    %v226 = vmul.f32 %v225, 0.6931472
    %v227 = vadd.f32 %v226, %v214
    %v228 = vsel %vm112, %v94, 0.0
    %v229 = vsel %vm187, %v228, 0.0
    %v230 = vrot.slane %v229, 4
    %v231 = vadd.f32 %v229, %v230
    %v232 = vrot.slane %v231, 2
    %v233 = vadd.f32 %v231, %v232
    %v234 = vrot.slane %v233, 1
    %v235 = vadd.f32 %v233, %v234
    %v236 = vadd.f32 %v207, %v227
    %v237 = vmul.f32 %v236, 0.5
    %v238 = vsub.f32 %v237, %v235
    %vm239 = vcmask 24576
    %240 = vst.msk [vmem:[#allocation3] sm:$0x1] %vm239, %v238
    // Predicated region
    $region18: #{fgsbir_fused_forward.3} parent=1 // pred_check
      _
    $region19: #{fgsbir_fused_forward.3} parent=1 // pred_check_branch
      %242 = sbr.rel (0) target = $region21
    $region20: #{fgsbir_fused_forward.3} parent=1 // pred_region
      %s244 = ssub.s32 16, 16
      %245 = vsyncadd [#allocation4], %s244
      %s247 = sshll.u32 [#allocation3], 4
      %s248 = int_to_ptr.vmem [resolvable:$true] %s247
      %250 = dma.vmem_to_hbm [thread:$0]  %s248, 16, %s4, [#allocation4]
    $region21: #{fgsbir_fused_forward.3} parent=1 // pred_fallthru
      _
    // Predicated region
    $region22: #{fgsbir_fused_forward.3} parent=1 // pred_check
      _
    $region23: #{fgsbir_fused_forward.3} parent=1 // pred_check_branch
      %252 = sbr.rel (0) target = $region25
    $region24: #{fgsbir_fused_forward.3} parent=1 // pred_region
      %253 = dma.done [#allocation4], 16
    $region25: #{fgsbir_fused_forward.3} parent=1 // pred_fallthru
      _
    %254 = vsyncpa [#allocation4], 1

// kernel: fgsbir_fused_forward.2
$region0: #{fgsbir_fused_forward.2}
  #allocation0 [shape = 'u32[]', space=smem, size = 0x4, offset = 0x4, fixed_abs, tag = 'smem constant byte address 0x4 - core index']
  #allocation1 [shape = 'u32[144,128]{1,0:T(1,128)}', space=vmem, size = 0x12000, scoped, tag = 'internal scratch']
  %s0 = inlined_call_operand.vmem [shape: bf16[16,1024], index: 0, kind: input, shape index: {}]
  %s1 = inlined_call_operand.vmem [shape: f32[32,4], index: 1, kind: input, shape index: {}]
  %s2 = inlined_call_operand.vmem [shape: f32[32,128], index: 2, kind: input, shape index: {}]
  %s3 = inlined_call_operand.vmem [shape: f32[1,128], index: 3, kind: input, shape index: {}]
  %s4 = inlined_call_operand.vmem [shape: f32[16,128], index: 4, kind: output, shape index: {}]
  %s5 = sld [smem:[#allocation0]]
  $region49: #{fgsbir_fused_forward.2} parent=0
    _
  %s7 = ssub.s32 1, %s5
  %s8 = scalar_select 0, %s7, %s5
  loop: start=0, step=1, limit=4
  $region2: #{fgsbir_fused_forward.2} parent=0 // loop_pre_header
    _
  $region3: #{fgsbir_fused_forward.2} parent=0 // loop_header
    %s10 = sphi 0, %s14
    %p11 = scmp.ge.s32.totalorder %s10, 4
    %s20 = sphi 0, %s22
    %s23 = sphi 0, %s20
    %s24 = sphi 0, %s23
    %s40 = sphi 0, %s24
    %s44 = sphi 0, %s44
    %s46 = sphi 0, %s44
    %s47 = sphi 0, %s46
    %s61 = sphi 0, %s47
    %s65 = sphi 0, %s65
    %s67 = sphi 0, %s65
    %s68 = sphi 0, %s67
    %s82 = sphi 0, %s68
    %s86 = sphi 0, %s86
    %s88 = sphi 0, %s86
    %s89 = sphi 0, %s88
    %s103 = sphi 0, %s89
    %s109 = sphi 0, %s111
    %s112 = sphi 0, %s109
    %s113 = sphi 0, %s112
    %s129 = sphi 0, %s113
  $region4: #{fgsbir_fused_forward.2} parent=0 // loop_header_branch
    %13 = sbr.rel (%p11) target = $region8
  $region5: #{fgsbir_fused_forward.2} parent=0 // loop_body
    %s15 = ssub.s32 %s10, 1
    %s16 = ssub.s32 %s10, 2
    %s17 = sadd.s32 %s10, 1
    %s18 = ssub.s32 %s10, %s17
    %p19 = scmp.eq.s32.totalorder %s18, 0
    %s21 = sadd.s32 %s20, 1
    %s22 = scalar_select %p19, %s20, %s21
    %p25 = pneg %p19
    %p26 = scmp.eq.s32.totalorder %s10, 1
    %p27 = por %p25, %p26
    %p28 = scmp.ne.s32.totalorder %s20, %s23
    %p29 = scmp.eq.s32.totalorder %s10, 0
    %p30 = por %p28, %p29
    %p31 = scmp.ne.s32.totalorder %s20, %s23
    %p32 = scmp.eq.s32.totalorder %s15, 1
    %p33 = por %p31, %p32
    %p34 = scmp.ne.s32.totalorder %s23, %s24
    %p35 = scmp.eq.s32.totalorder %s15, 0
    %p36 = por %p34, %p35
    %p37 = scmp.ne.s32.totalorder %s23, %s24
    %p38 = scmp.eq.s32.totalorder %s16, 1
    %p39 = por %p37, %p38
    %p41 = scmp.ne.s32.totalorder %s24, %s40
    %p42 = scmp.eq.s32.totalorder %s16, 0
    %p43 = por %p41, %p42
    %s45 = sadd.s32 %s44, 1
    %p48 = scmp.eq.s32.totalorder %s10, 1
    %p49 = scmp.ne.s32.totalorder %s44, %s46
    %p50 = scmp.eq.s32.totalorder %s10, 0
    %p51 = por %p49, %p50
    %p52 = scmp.ne.s32.totalorder %s44, %s46
    %p53 = scmp.eq.s32.totalorder %s15, 1
    %p54 = por %p52, %p53
    %p55 = scmp.ne.s32.totalorder %s46, %s47
    %p56 = scmp.eq.s32.totalorder %s15, 0
    %p57 = por %p55, %p56
    %p58 = scmp.ne.s32.totalorder %s46, %s47
    %p59 = scmp.eq.s32.totalorder %s16, 1
    %p60 = por %p58, %p59
    %p62 = scmp.ne.s32.totalorder %s47, %s61
    %p63 = scmp.eq.s32.totalorder %s16, 0
    %p64 = por %p62, %p63
    %s66 = sadd.s32 %s65, 1
    %p69 = scmp.eq.s32.totalorder %s10, 1
    %p70 = scmp.ne.s32.totalorder %s65, %s67
    %p71 = scmp.eq.s32.totalorder %s10, 0
    %p72 = por %p70, %p71
    %p73 = scmp.ne.s32.totalorder %s65, %s67
    %p74 = scmp.eq.s32.totalorder %s15, 1
    %p75 = por %p73, %p74
    %p76 = scmp.ne.s32.totalorder %s67, %s68
    %p77 = scmp.eq.s32.totalorder %s15, 0
    %p78 = por %p76, %p77
    %p79 = scmp.ne.s32.totalorder %s67, %s68
    %p80 = scmp.eq.s32.totalorder %s16, 1
    %p81 = por %p79, %p80
    %p83 = scmp.ne.s32.totalorder %s68, %s82
    %p84 = scmp.eq.s32.totalorder %s16, 0
    %p85 = por %p83, %p84
    %s87 = sadd.s32 %s86, 1
    %p90 = scmp.eq.s32.totalorder %s10, 1
    %p91 = scmp.ne.s32.totalorder %s86, %s88
    %p92 = scmp.eq.s32.totalorder %s10, 0
    %p93 = por %p91, %p92
    %p94 = scmp.ne.s32.totalorder %s86, %s88
    %p95 = scmp.eq.s32.totalorder %s15, 1
    %p96 = por %p94, %p95
    %p97 = scmp.ne.s32.totalorder %s88, %s89
    %p98 = scmp.eq.s32.totalorder %s15, 0
    %p99 = por %p97, %p98
    %p100 = scmp.ne.s32.totalorder %s88, %s89
    %p101 = scmp.eq.s32.totalorder %s16, 1
    %p102 = por %p100, %p101
    %p104 = scmp.ne.s32.totalorder %s89, %s103
    %p105 = scmp.eq.s32.totalorder %s16, 0
    %p106 = por %p104, %p105
    %s107 = ssub.s32 %s10, %s17
    %p108 = scmp.eq.s32.totalorder %s107, 0
    %s110 = sadd.s32 %s109, 1
    %s111 = scalar_select %p108, %s109, %s110
    %p114 = pneg %p108
    %p115 = scmp.eq.s32.totalorder %s10, 1
    %p116 = por %p114, %p115
    %p117 = scmp.ne.s32.totalorder %s109, %s112
    %p118 = scmp.eq.s32.totalorder %s10, 0
    %p119 = por %p117, %p118
    %p120 = scmp.ne.s32.totalorder %s109, %s112
    %p121 = scmp.eq.s32.totalorder %s15, 1
    %p122 = por %p120, %p121
    %p123 = scmp.ne.s32.totalorder %s112, %s113
    %p124 = scmp.eq.s32.totalorder %s15, 0
    %p125 = por %p123, %p124
    %p126 = scmp.ne.s32.totalorder %s112, %s113
    %p127 = scmp.eq.s32.totalorder %s16, 1
    %p128 = por %p126, %p127
    %p130 = scmp.ne.s32.totalorder %s113, %s129
    %p131 = scmp.eq.s32.totalorder %s16, 0
    %p132 = por %p130, %p131
    %p133 = scmp.le.s32.totalorder 1, %s10
    %p134 = scmp.lt.s32.totalorder %s10, 3
    %p135 = pnand %p133, %p134
    %p136 = pneg %p135
    // Predicated region
    $region9: #{fgsbir_fused_forward.2} parent=5 // pred_check
      _
    $region10: #{fgsbir_fused_forward.2} parent=5 // pred_check_branch
      %138 = sbr.rel (%p135) target = $region12
    $region11: #{fgsbir_fused_forward.2} parent=5 // pred_region
      %s139 = ssub.s32 %s10, 1
      // Predicated region
      $region13: #{fgsbir_fused_forward.2} parent=11 // pred_check
        %p140 = pneg %p57
      $region14: #{fgsbir_fused_forward.2} parent=11 // pred_check_branch
        %142 = sbr.rel (%p140) target = $region16
      $region15: #{fgsbir_fused_forward.2} parent=11 // pred_region
        _
      $region16: #{fgsbir_fused_forward.2} parent=11 // pred_fallthru
        _
      // Predicated region
      $region17: #{fgsbir_fused_forward.2} parent=11 // pred_check
        %p143 = pneg %p78
      $region18: #{fgsbir_fused_forward.2} parent=11 // pred_check_branch
        %145 = sbr.rel (%p143) target = $region20
      $region19: #{fgsbir_fused_forward.2} parent=11 // pred_region
        _
      $region20: #{fgsbir_fused_forward.2} parent=11 // pred_fallthru
        _
      // Predicated region
      $region21: #{fgsbir_fused_forward.2} parent=11 // pred_check
        %p146 = pneg %p99
      $region22: #{fgsbir_fused_forward.2} parent=11 // pred_check_branch
        %148 = sbr.rel (%p146) target = $region24
      $region23: #{fgsbir_fused_forward.2} parent=11 // pred_region
        _
      $region24: #{fgsbir_fused_forward.2} parent=11 // pred_fallthru
        _
    $region12: #{fgsbir_fused_forward.2} parent=5 // pred_fallthru
      _
    %p149 = scmp.lt.s32.totalorder %s10, 2
    // Predicated region
    $region25: #{fgsbir_fused_forward.2} parent=5 // pred_check
      %p150 = pneg %p149
    $region26: #{fgsbir_fused_forward.2} parent=5 // pred_check_branch
      %152 = sbr.rel (%p150) target = $region28
    $region27: #{fgsbir_fused_forward.2} parent=5 // pred_region
      // Predicated region
      $region29: #{fgsbir_fused_forward.2} parent=27 // pred_check
        %p153 = pneg %p30
      $region30: #{fgsbir_fused_forward.2} parent=27 // pred_check_branch
        %155 = sbr.rel (%p153) target = $region32
      $region31: #{fgsbir_fused_forward.2} parent=27 // pred_region
        %p156 = scmp.lt.s32.totalorder %s10, 1
        %s157 = scalar_select %p156, %s10, 1
        %s158 = smul.addr %s157, 8
        %s159 = smul.addr %s158, 4
        %s160 = scalar_lea.vmem %s0, %s159
      $region32: #{fgsbir_fused_forward.2} parent=27 // pred_fallthru
        _
    $region28: #{fgsbir_fused_forward.2} parent=5 // pred_fallthru
      _
    %p161 = scmp.le.s32.totalorder 1, %s10
    %p162 = scmp.lt.s32.totalorder %s10, 3
    %p163 = pnand %p161, %p162
    %p164 = pneg %p163
    // Predicated region
    $region33: #{fgsbir_fused_forward.2} parent=5 // pred_check
      _
    $region34: #{fgsbir_fused_forward.2} parent=5 // pred_check_branch
      %166 = sbr.rel (%p163) target = $region36
    $region35: #{fgsbir_fused_forward.2} parent=5 // pred_region
      %s167 = ssub.s32 %s10, 1
      %p168 = scmp.lt.s32.totalorder %s15, 1
      %s169 = scalar_select %p168, %s15, 1
      %s170 = smul.addr %s169, 8
      %s171 = smul.addr %s170, 4
      %s172 = scalar_lea.vmem %s0, %s171
      %p173 = pneg %p36
      %p174 = pneg %p33
      %p175 = pneg %p57
      %p176 = pneg %p54
      %p177 = pneg %p78
      %p178 = pneg %p75
      %p179 = pneg %p99
      %p180 = pneg %p96
      %p181 = pneg %p125
      %p182 = pneg %p122
      %p183 = scmp.lt.s32.totalorder %s15, 1
      %s184 = scalar_select %p183, %s15, 1
      %s185 = smul.addr %s184, 8
      %s186 = scalar_lea.vmem %s4, %s185
      %p187 = scmp.lt.s32.totalorder %s15, 1
      %s188 = scalar_select %p187, %s15, 1
      %s189 = smul.addr %s188, 8
      %s190 = smul.addr %s189, 4
      %s191 = scalar_lea.vmem %s0, %s190
      %p192 = scmp.lt.s32.totalorder %s15, 1
      %s193 = scalar_select %p192, %s15, 1
      %s194 = smul.addr %s193, 8
      %s195 = scalar_lea.vmem %s4, %s194
      %v196 = vld [vmem:[%s1] sm:$0xff]
      %v197 = vld [vmem:[%s1 + $0x8] sm:$0xff]
      %v198 = vld [vmem:[%s1 + $0x10] sm:$0xff]
      %v199 = vld [vmem:[%s1 + $0x18] sm:$0xff]
      %v200 = vld [vmem:[%s191] sm:$0xff]
      %v201 = vunpack.c.l.bf16 %v200
      %v202 = vunpack.c.h.bf16 %v200
      %v205 = vcombine.low %v201, %v202
      %v206 = vcombine.high %v201, %v202
      %v208 = vunpack.c.l.s4 1966171168
      %v209 = vunpack.c.0.s8 %v208
      %v210 = vlaneseq
      %v211 = vshrl.u32 %v210, 7
      %v212 = vsub.s32 %v209, %v211
      %v213 = vrot.slane %v205, %v212
      %v215 = vunpack.c.l.s4 1966171168
      %v216 = vunpack.c.0.s8 %v215
      %v217 = vlaneseq
      %v218 = vshrl.u32 %v217, 7
      %v219 = vsub.s32 %v216, %v218
      %v220 = vrot.slane %v206, %v219
      %v221 = vcombine.high %v213, %v213
      %v222 = vcombine.high %v220, %v220
      %v224 = vunpack.c.l.s4 1966171168
      %v225 = vunpack.c.0.s8 %v224
      %v226 = vlaneseq
      %v227 = vshrl.u32 %v226, 7
      %v228 = vsub.s32 %v225, %v227
      %v229 = vrot.slane %v213, %v228
      %v231 = vunpack.c.l.s4 1966171168
      %v232 = vunpack.c.0.s8 %v231
      %v233 = vlaneseq
      %v234 = vshrl.u32 %v233, 7
      %v235 = vsub.s32 %v232, %v234
      %v236 = vrot.slane %v220, %v235
      %v238 = vunpack.c.l.s4 1966171168
      %v239 = vunpack.c.0.s8 %v238
      %v240 = vlaneseq
      %v241 = vshrl.u32 %v240, 7
      %v242 = vsub.s32 %v239, %v241
      %v243 = vrot.slane %v221, %v242
      %v245 = vunpack.c.l.s4 1966171168
      %v246 = vunpack.c.0.s8 %v245
      %v247 = vlaneseq
      %v248 = vshrl.u32 %v247, 7
      %v249 = vsub.s32 %v246, %v248
      %v250 = vrot.slane %v222, %v249
      %v251 = vcombine.high %v229, %v229
      %v252 = vcombine.high %v236, %v236
      %v253 = vcombine.high %v243, %v243
      %v254 = vcombine.high %v250, %v250
      %v255 = vlaneseq
      %v256 = vshrl.u32 %v255, 7
      %v257 = vsub.s32 0, %v256
      %v258 = vrot.slane %v229, %v257
      %v259 = vlaneseq
      %v260 = vshrl.u32 %v259, 7
      %v261 = vsub.s32 1, %v260
      %v262 = vrot.slane %v229, %v261
      %v263 = vlaneseq
      %v264 = vshrl.u32 %v263, 7
      %v265 = vsub.s32 0, %v264
      %v266 = vrot.slane %v243, %v265
      %v267 = vlaneseq
      %v268 = vshrl.u32 %v267, 7
      %v269 = vsub.s32 1, %v268
      %v270 = vrot.slane %v243, %v269
      %v271 = vlaneseq
      %v272 = vshrl.u32 %v271, 7
      %v273 = vsub.s32 0, %v272
      %v274 = vrot.slane %v251, %v273
      %v275 = vlaneseq
      %v276 = vshrl.u32 %v275, 7
      %v277 = vsub.s32 1, %v276
      %v278 = vrot.slane %v251, %v277
      %v279 = vlaneseq
      %v280 = vshrl.u32 %v279, 7
      %v281 = vsub.s32 0, %v280
      %v282 = vrot.slane %v253, %v281
      %v283 = vlaneseq
      %v284 = vshrl.u32 %v283, 7
      %v285 = vsub.s32 1, %v284
      %v286 = vrot.slane %v253, %v285
      %v287 = vlaneseq
      %v288 = vshrl.u32 %v287, 7
      %v289 = vsub.s32 0, %v288
      %v290 = vrot.slane %v236, %v289
      %v291 = vlaneseq
      %v292 = vshrl.u32 %v291, 7
      %v293 = vsub.s32 1, %v292
      %v294 = vrot.slane %v236, %v293
      %v295 = vlaneseq
      %v296 = vshrl.u32 %v295, 7
      %v297 = vsub.s32 0, %v296
      %v298 = vrot.slane %v250, %v297
      %v299 = vlaneseq
      %v300 = vshrl.u32 %v299, 7
      %v301 = vsub.s32 1, %v300
      %v302 = vrot.slane %v250, %v301
      %v303 = vlaneseq
      %v304 = vshrl.u32 %v303, 7
      %v305 = vsub.s32 0, %v304
      %v306 = vrot.slane %v252, %v305
      %v307 = vlaneseq
      %v308 = vshrl.u32 %v307, 7
      %v309 = vsub.s32 1, %v308
      %v310 = vrot.slane %v252, %v309
      %v311 = vlaneseq
      %v312 = vshrl.u32 %v311, 7
      %v313 = vsub.s32 0, %v312
      %v314 = vrot.slane %v254, %v313
      %v315 = vlaneseq
      %v316 = vshrl.u32 %v315, 7
      %v317 = vsub.s32 1, %v316
      %v318 = vrot.slane %v254, %v317
      %336 = vset.pattern.permute.xlu0 0
      %337 = vperm.xlu0 %336, %v196
      %v338 = vpop.permute.xlu0 %337
      %341 = vset.pattern.permute.xlu0 0
      %342 = vperm.xlu0 %341, %v197
      %v343 = vpop.permute.xlu0 %342
      %346 = vset.pattern.permute.xlu0 0
      %347 = vperm.xlu0 %346, %v198
      %v348 = vpop.permute.xlu0 %347
      %351 = vset.pattern.permute.xlu0 0
      %352 = vperm.xlu0 %351, %v199
      %v353 = vpop.permute.xlu0 %352
      %v355 = vmul.f32 %v258, %v338
      %v356 = vmul.f32 %v262, %v338
      %v357 = vmul.f32 %v258, %v343
      %v358 = vmul.f32 %v262, %v343
      %v359 = vmul.f32 %v258, %v348
      %v360 = vmul.f32 %v262, %v348
      %v361 = vmul.f32 %v258, %v353
      %v362 = vmul.f32 %v262, %v353
      %v363 = vmul.f32 %v266, %v338
      %v364 = vmul.f32 %v270, %v338
      %v365 = vmul.f32 %v266, %v343
      %v366 = vmul.f32 %v270, %v343
      %v367 = vmul.f32 %v266, %v348
      %v368 = vmul.f32 %v270, %v348
      %v369 = vmul.f32 %v266, %v353
      %v370 = vmul.f32 %v270, %v353
      %v371 = vmul.f32 %v274, %v338
      %v372 = vmul.f32 %v278, %v338
      %v373 = vmul.f32 %v274, %v343
      %v374 = vmul.f32 %v278, %v343
      %v375 = vmul.f32 %v274, %v348
      %v376 = vmul.f32 %v278, %v348
      %v377 = vmul.f32 %v274, %v353
      %v378 = vmul.f32 %v278, %v353
      %v379 = vmul.f32 %v282, %v338
      %v380 = vmul.f32 %v286, %v338
      %v381 = vmul.f32 %v282, %v343
      %v382 = vmul.f32 %v286, %v343
      %v383 = vmul.f32 %v282, %v348
      %v384 = vmul.f32 %v286, %v348
      %v385 = vmul.f32 %v282, %v353
      %v386 = vmul.f32 %v286, %v353
      %v387 = vmul.f32 %v290, %v338
      %v388 = vmul.f32 %v294, %v338
      %v389 = vmul.f32 %v290, %v343
      %v390 = vmul.f32 %v294, %v343
      %v391 = vmul.f32 %v290, %v348
      %v392 = vmul.f32 %v294, %v348
      %v393 = vmul.f32 %v290, %v353
      %v394 = vmul.f32 %v294, %v353
      %v395 = vmul.f32 %v298, %v338
      %v396 = vmul.f32 %v302, %v338
      %v397 = vmul.f32 %v298, %v343
      %v398 = vmul.f32 %v302, %v343
      %v399 = vmul.f32 %v298, %v348
      %v400 = vmul.f32 %v302, %v348
      %v401 = vmul.f32 %v298, %v353
      %v402 = vmul.f32 %v302, %v353
      %v403 = vmul.f32 %v306, %v338
      %v404 = vmul.f32 %v310, %v338
      %v405 = vmul.f32 %v306, %v343
      %v406 = vmul.f32 %v310, %v343
      %v407 = vmul.f32 %v306, %v348
      %v408 = vmul.f32 %v310, %v348
      %v409 = vmul.f32 %v306, %v353
      %v410 = vmul.f32 %v310, %v353
      %v411 = vmul.f32 %v314, %v338
      %v412 = vmul.f32 %v318, %v338
      %v413 = vmul.f32 %v314, %v343
      %v414 = vmul.f32 %v318, %v343
      %v415 = vmul.f32 %v314, %v348
      %v416 = vmul.f32 %v318, %v348
      %v417 = vmul.f32 %v314, %v353
      %v418 = vmul.f32 %v318, %v353
      %v419 = vld [vmem:[%s191 + $0x8] sm:$0xff]
      %v420 = vunpack.c.l.bf16 %v419
      %v421 = vunpack.c.h.bf16 %v419
      %v424 = vcombine.low %v420, %v421
      %v425 = vcombine.high %v420, %v421
      %v427 = vunpack.c.l.s4 1966171168
      %v428 = vunpack.c.0.s8 %v427
      %v429 = vlaneseq
      %v430 = vshrl.u32 %v429, 7
      %v431 = vsub.s32 %v428, %v430
      %v432 = vrot.slane %v424, %v431
      %v434 = vunpack.c.l.s4 1966171168
      %v435 = vunpack.c.0.s8 %v434
      %v436 = vlaneseq
      %v437 = vshrl.u32 %v436, 7
      %v438 = vsub.s32 %v435, %v437
      %v439 = vrot.slane %v425, %v438
      %v440 = vcombine.high %v432, %v432
      %v441 = vcombine.high %v439, %v439
      %v443 = vunpack.c.l.s4 1966171168
      %v444 = vunpack.c.0.s8 %v443
      %v445 = vlaneseq
      %v446 = vshrl.u32 %v445, 7
      %v447 = vsub.s32 %v444, %v446
      %v448 = vrot.slane %v432, %v447
      %v450 = vunpack.c.l.s4 1966171168
      %v451 = vunpack.c.0.s8 %v450
      %v452 = vlaneseq
      %v453 = vshrl.u32 %v452, 7
      %v454 = vsub.s32 %v451, %v453
      %v455 = vrot.slane %v439, %v454
      %v457 = vunpack.c.l.s4 1966171168
      %v458 = vunpack.c.0.s8 %v457
      %v459 = vlaneseq
      %v460 = vshrl.u32 %v459, 7
      %v461 = vsub.s32 %v458, %v460
      %v462 = vrot.slane %v440, %v461
      %v464 = vunpack.c.l.s4 1966171168
      %v465 = vunpack.c.0.s8 %v464
      %v466 = vlaneseq
      %v467 = vshrl.u32 %v466, 7
      %v468 = vsub.s32 %v465, %v467
      %v469 = vrot.slane %v441, %v468
      %v470 = vcombine.high %v448, %v448
      %v471 = vcombine.high %v455, %v455
      %v472 = vcombine.high %v462, %v462
      %v473 = vcombine.high %v469, %v469
      %v474 = vlaneseq
      %v475 = vshrl.u32 %v474, 7
      %v476 = vsub.s32 0, %v475
      %v477 = vrot.slane %v448, %v476
      %v478 = vlaneseq
      %v479 = vshrl.u32 %v478, 7
      %v480 = vsub.s32 1, %v479
      %v481 = vrot.slane %v448, %v480
      %v482 = vlaneseq
      %v483 = vshrl.u32 %v482, 7
      %v484 = vsub.s32 0, %v483
      %v485 = vrot.slane %v462, %v484
      %v486 = vlaneseq
      %v487 = vshrl.u32 %v486, 7
      %v488 = vsub.s32 1, %v487
      %v489 = vrot.slane %v462, %v488
      %v490 = vlaneseq
      %v491 = vshrl.u32 %v490, 7
      %v492 = vsub.s32 0, %v491
      %v493 = vrot.slane %v470, %v492
      %v494 = vlaneseq
      %v495 = vshrl.u32 %v494, 7
      %v496 = vsub.s32 1, %v495
      %v497 = vrot.slane %v470, %v496
      %v498 = vlaneseq
      %v499 = vshrl.u32 %v498, 7
      %v500 = vsub.s32 0, %v499
      %v501 = vrot.slane %v472, %v500
      %v502 = vlaneseq
      %v503 = vshrl.u32 %v502, 7
      %v504 = vsub.s32 1, %v503
      %v505 = vrot.slane %v472, %v504
      %v506 = vlaneseq
      %v507 = vshrl.u32 %v506, 7
      %v508 = vsub.s32 0, %v507
      %v509 = vrot.slane %v455, %v508
      %v510 = vlaneseq
      %v511 = vshrl.u32 %v510, 7
      %v512 = vsub.s32 1, %v511
      %v513 = vrot.slane %v455, %v512
      %v514 = vlaneseq
      %v515 = vshrl.u32 %v514, 7
      %v516 = vsub.s32 0, %v515
      %v517 = vrot.slane %v469, %v516
      %v518 = vlaneseq
      %v519 = vshrl.u32 %v518, 7
      %v520 = vsub.s32 1, %v519
      %v521 = vrot.slane %v469, %v520
      %v522 = vlaneseq
      %v523 = vshrl.u32 %v522, 7
      %v524 = vsub.s32 0, %v523
      %v525 = vrot.slane %v471, %v524
      %v526 = vlaneseq
      %v527 = vshrl.u32 %v526, 7
      %v528 = vsub.s32 1, %v527
      %v529 = vrot.slane %v471, %v528
      %v530 = vlaneseq
      %v531 = vshrl.u32 %v530, 7
      %v532 = vsub.s32 0, %v531
      %v533 = vrot.slane %v473, %v532
      %v534 = vlaneseq
      %v535 = vshrl.u32 %v534, 7
      %v536 = vsub.s32 1, %v535
      %v537 = vrot.slane %v473, %v536
      %554 = vset.pattern.permute.xlu0 1
      %555 = vperm.xlu0 %554, %v196
      %v556 = vpop.permute.xlu0 %555
      %558 = vset.pattern.permute.xlu0 1
      %559 = vperm.xlu0 %558, %v197
      %v560 = vpop.permute.xlu0 %559
      %562 = vset.pattern.permute.xlu0 1
      %563 = vperm.xlu0 %562, %v198
      %v564 = vpop.permute.xlu0 %563
      %566 = vset.pattern.permute.xlu0 1
      %567 = vperm.xlu0 %566, %v199
      %v568 = vpop.permute.xlu0 %567
      %v570 = vmul.f32 %v477, %v556
      %v571 = vmul.f32 %v481, %v556
      %v572 = vmul.f32 %v477, %v560
      %v573 = vmul.f32 %v481, %v560
      %v574 = vmul.f32 %v477, %v564
      %v575 = vmul.f32 %v481, %v564
      %v576 = vmul.f32 %v477, %v568
      %v577 = vmul.f32 %v481, %v568
      %v578 = vmul.f32 %v485, %v556
      %v579 = vmul.f32 %v489, %v556
      %v580 = vmul.f32 %v485, %v560
      %v581 = vmul.f32 %v489, %v560
      %v582 = vmul.f32 %v485, %v564
      %v583 = vmul.f32 %v489, %v564
      %v584 = vmul.f32 %v485, %v568
      %v585 = vmul.f32 %v489, %v568
      %v586 = vmul.f32 %v493, %v556
      %v587 = vmul.f32 %v497, %v556
      %v588 = vmul.f32 %v493, %v560
      %v589 = vmul.f32 %v497, %v560
      %v590 = vmul.f32 %v493, %v564
      %v591 = vmul.f32 %v497, %v564
      %v592 = vmul.f32 %v493, %v568
      %v593 = vmul.f32 %v497, %v568
      %v594 = vmul.f32 %v501, %v556
      %v595 = vmul.f32 %v505, %v556
      %v596 = vmul.f32 %v501, %v560
      %v597 = vmul.f32 %v505, %v560
      %v598 = vmul.f32 %v501, %v564
      %v599 = vmul.f32 %v505, %v564
      %v600 = vmul.f32 %v501, %v568
      %v601 = vmul.f32 %v505, %v568
      %v602 = vmul.f32 %v509, %v556
      %v603 = vmul.f32 %v513, %v556
      %v604 = vmul.f32 %v509, %v560
      %v605 = vmul.f32 %v513, %v560
      %v606 = vmul.f32 %v509, %v564
      %v607 = vmul.f32 %v513, %v564
      %v608 = vmul.f32 %v509, %v568
      %v609 = vmul.f32 %v513, %v568
      %v610 = vmul.f32 %v517, %v556
      %v611 = vmul.f32 %v521, %v556
      %v612 = vmul.f32 %v517, %v560
      %v613 = vmul.f32 %v521, %v560
      %v614 = vmul.f32 %v517, %v564
      %v615 = vmul.f32 %v521, %v564
      %v616 = vmul.f32 %v517, %v568
      %v617 = vmul.f32 %v521, %v568
      %v618 = vmul.f32 %v525, %v556
      %v619 = vmul.f32 %v529, %v556
      %v620 = vmul.f32 %v525, %v560
      %v621 = vmul.f32 %v529, %v560
      %v622 = vmul.f32 %v525, %v564
      %v623 = vmul.f32 %v529, %v564
      %v624 = vmul.f32 %v525, %v568
      %v625 = vmul.f32 %v529, %v568
      %v626 = vmul.f32 %v533, %v556
      %v627 = vmul.f32 %v537, %v556
      %v628 = vmul.f32 %v533, %v560
      %v629 = vmul.f32 %v537, %v560
      %v630 = vmul.f32 %v533, %v564
      %v631 = vmul.f32 %v537, %v564
      %v632 = vmul.f32 %v533, %v568
      %v633 = vmul.f32 %v537, %v568
      %v634 = vadd.f32 %v355, %v570
      %v635 = vadd.f32 %v356, %v571
      %v636 = vadd.f32 %v357, %v572
      %v637 = vadd.f32 %v358, %v573
      %v638 = vadd.f32 %v359, %v574
      %v639 = vadd.f32 %v360, %v575
      %v640 = vadd.f32 %v361, %v576
      %v641 = vadd.f32 %v362, %v577
      %v642 = vadd.f32 %v363, %v578
      %v643 = vadd.f32 %v364, %v579
      %v644 = vadd.f32 %v365, %v580
      %v645 = vadd.f32 %v366, %v581
      %v646 = vadd.f32 %v367, %v582
      %v647 = vadd.f32 %v368, %v583
      %v648 = vadd.f32 %v369, %v584
      %v649 = vadd.f32 %v370, %v585
      %v650 = vadd.f32 %v371, %v586
      %v651 = vadd.f32 %v372, %v587
      %v652 = vadd.f32 %v373, %v588
      %v653 = vadd.f32 %v374, %v589
      %v654 = vadd.f32 %v375, %v590
      %v655 = vadd.f32 %v376, %v591
      %v656 = vadd.f32 %v377, %v592
      %v657 = vadd.f32 %v378, %v593
      %v658 = vadd.f32 %v379, %v594
      %v659 = vadd.f32 %v380, %v595
      %v660 = vadd.f32 %v381, %v596
      %v661 = vadd.f32 %v382, %v597
      %v662 = vadd.f32 %v383, %v598
      %v663 = vadd.f32 %v384, %v599
      %v664 = vadd.f32 %v385, %v600
      %v665 = vadd.f32 %v386, %v601
      %v666 = vadd.f32 %v387, %v602
      %v667 = vadd.f32 %v388, %v603
      %v668 = vadd.f32 %v389, %v604
      %v669 = vadd.f32 %v390, %v605
      %v670 = vadd.f32 %v391, %v606
      %v671 = vadd.f32 %v392, %v607
      %v672 = vadd.f32 %v393, %v608
      %v673 = vadd.f32 %v394, %v609
      %v674 = vadd.f32 %v395, %v610
      %v675 = vadd.f32 %v396, %v611
      %v676 = vadd.f32 %v397, %v612
      %v677 = vadd.f32 %v398, %v613
      %v678 = vadd.f32 %v399, %v614
      %v679 = vadd.f32 %v400, %v615
      %v680 = vadd.f32 %v401, %v616
      %v681 = vadd.f32 %v402, %v617
      %v682 = vadd.f32 %v403, %v618
      %v683 = vadd.f32 %v404, %v619
      %v684 = vadd.f32 %v405, %v620
      %v685 = vadd.f32 %v406, %v621
      %v686 = vadd.f32 %v407, %v622
      %v687 = vadd.f32 %v408, %v623
      %v688 = vadd.f32 %v409, %v624
      %v689 = vadd.f32 %v410, %v625
      %v690 = vadd.f32 %v411, %v626
      %v691 = vadd.f32 %v412, %v627
      %v692 = vadd.f32 %v413, %v628
      %v693 = vadd.f32 %v414, %v629
      %v694 = vadd.f32 %v415, %v630
      %v695 = vadd.f32 %v416, %v631
      %v696 = vadd.f32 %v417, %v632
      %v697 = vadd.f32 %v418, %v633
      %v698 = vld [vmem:[%s191 + $0x10] sm:$0xff]
      %v699 = vunpack.c.l.bf16 %v698
      %v700 = vunpack.c.h.bf16 %v698
      %v703 = vcombine.low %v699, %v700
      %v704 = vcombine.high %v699, %v700
      %v706 = vunpack.c.l.s4 1966171168
      %v707 = vunpack.c.0.s8 %v706
      %v708 = vlaneseq
      %v709 = vshrl.u32 %v708, 7
      %v710 = vsub.s32 %v707, %v709
      %v711 = vrot.slane %v703, %v710
      %v713 = vunpack.c.l.s4 1966171168
      %v714 = vunpack.c.0.s8 %v713
      %v715 = vlaneseq
      %v716 = vshrl.u32 %v715, 7
      %v717 = vsub.s32 %v714, %v716
      %v718 = vrot.slane %v704, %v717
      %v719 = vcombine.high %v711, %v711
      %v720 = vcombine.high %v718, %v718
      %v722 = vunpack.c.l.s4 1966171168
      %v723 = vunpack.c.0.s8 %v722
      %v724 = vlaneseq
      %v725 = vshrl.u32 %v724, 7
      %v726 = vsub.s32 %v723, %v725
      %v727 = vrot.slane %v711, %v726
      %v729 = vunpack.c.l.s4 1966171168
      %v730 = vunpack.c.0.s8 %v729
      %v731 = vlaneseq
      %v732 = vshrl.u32 %v731, 7
      %v733 = vsub.s32 %v730, %v732
      %v734 = vrot.slane %v718, %v733
      %v736 = vunpack.c.l.s4 1966171168
      %v737 = vunpack.c.0.s8 %v736
      %v738 = vlaneseq
      %v739 = vshrl.u32 %v738, 7
      %v740 = vsub.s32 %v737, %v739
      %v741 = vrot.slane %v719, %v740
      %v743 = vunpack.c.l.s4 1966171168
      %v744 = vunpack.c.0.s8 %v743
      %v745 = vlaneseq
      %v746 = vshrl.u32 %v745, 7
      %v747 = vsub.s32 %v744, %v746
      %v748 = vrot.slane %v720, %v747
      %v749 = vcombine.high %v727, %v727
      %v750 = vcombine.high %v734, %v734
      %v751 = vcombine.high %v741, %v741
      %v752 = vcombine.high %v748, %v748
      %v753 = vlaneseq
      %v754 = vshrl.u32 %v753, 7
      %v755 = vsub.s32 0, %v754
      %v756 = vrot.slane %v727, %v755
      %v757 = vlaneseq
      %v758 = vshrl.u32 %v757, 7
      %v759 = vsub.s32 1, %v758
      %v760 = vrot.slane %v727, %v759
      %v761 = vlaneseq
      %v762 = vshrl.u32 %v761, 7
      %v763 = vsub.s32 0, %v762
      %v764 = vrot.slane %v741, %v763
      %v765 = vlaneseq
      %v766 = vshrl.u32 %v765, 7
      %v767 = vsub.s32 1, %v766
      %v768 = vrot.slane %v741, %v767
      %v769 = vlaneseq
      %v770 = vshrl.u32 %v769, 7
      %v771 = vsub.s32 0, %v770
      %v772 = vrot.slane %v749, %v771
      %v773 = vlaneseq
      %v774 = vshrl.u32 %v773, 7
      %v775 = vsub.s32 1, %v774
      %v776 = vrot.slane %v749, %v775
      %v777 = vlaneseq
      %v778 = vshrl.u32 %v777, 7
      %v779 = vsub.s32 0, %v778
      %v780 = vrot.slane %v751, %v779
      %v781 = vlaneseq
      %v782 = vshrl.u32 %v781, 7
      %v783 = vsub.s32 1, %v782
      %v784 = vrot.slane %v751, %v783
      %v785 = vlaneseq
      %v786 = vshrl.u32 %v785, 7
      %v787 = vsub.s32 0, %v786
      %v788 = vrot.slane %v734, %v787
      %v789 = vlaneseq
      %v790 = vshrl.u32 %v789, 7
      %v791 = vsub.s32 1, %v790
      %v792 = vrot.slane %v734, %v791
      %v793 = vlaneseq
      %v794 = vshrl.u32 %v793, 7
      %v795 = vsub.s32 0, %v794
      %v796 = vrot.slane %v748, %v795
      %v797 = vlaneseq
      %v798 = vshrl.u32 %v797, 7
      %v799 = vsub.s32 1, %v798
      %v800 = vrot.slane %v748, %v799
      %v801 = vlaneseq
      %v802 = vshrl.u32 %v801, 7
      %v803 = vsub.s32 0, %v802
      %v804 = vrot.slane %v750, %v803
      %v805 = vlaneseq
      %v806 = vshrl.u32 %v805, 7
      %v807 = vsub.s32 1, %v806
      %v808 = vrot.slane %v750, %v807
      %v809 = vlaneseq
      %v810 = vshrl.u32 %v809, 7
      %v811 = vsub.s32 0, %v810
      %v812 = vrot.slane %v752, %v811
      %v813 = vlaneseq
      %v814 = vshrl.u32 %v813, 7
      %v815 = vsub.s32 1, %v814
      %v816 = vrot.slane %v752, %v815
      %833 = vset.pattern.permute.xlu0 2
      %834 = vperm.xlu0 %833, %v196
      %v835 = vpop.permute.xlu0 %834
      %837 = vset.pattern.permute.xlu0 2
      %838 = vperm.xlu0 %837, %v197
      %v839 = vpop.permute.xlu0 %838
      %841 = vset.pattern.permute.xlu0 2
      %842 = vperm.xlu0 %841, %v198
      %v843 = vpop.permute.xlu0 %842
      %845 = vset.pattern.permute.xlu0 2
      %846 = vperm.xlu0 %845, %v199
      %v847 = vpop.permute.xlu0 %846
      %v849 = vmul.f32 %v756, %v835
      %v850 = vmul.f32 %v760, %v835
      %v851 = vmul.f32 %v756, %v839
      %v852 = vmul.f32 %v760, %v839
      %v853 = vmul.f32 %v756, %v843
      %v854 = vmul.f32 %v760, %v843
      %v855 = vmul.f32 %v756, %v847
      %v856 = vmul.f32 %v760, %v847
      %v857 = vmul.f32 %v764, %v835
      %v858 = vmul.f32 %v768, %v835
      %v859 = vmul.f32 %v764, %v839
      %v860 = vmul.f32 %v768, %v839
      %v861 = vmul.f32 %v764, %v843
      %v862 = vmul.f32 %v768, %v843
      %v863 = vmul.f32 %v764, %v847
      %v864 = vmul.f32 %v768, %v847
      %v865 = vmul.f32 %v772, %v835
      %v866 = vmul.f32 %v776, %v835
      %v867 = vmul.f32 %v772, %v839
      %v868 = vmul.f32 %v776, %v839
      %v869 = vmul.f32 %v772, %v843
      %v870 = vmul.f32 %v776, %v843
      %v871 = vmul.f32 %v772, %v847
      %v872 = vmul.f32 %v776, %v847
      %v873 = vmul.f32 %v780, %v835
      %v874 = vmul.f32 %v784, %v835
      %v875 = vmul.f32 %v780, %v839
      %v876 = vmul.f32 %v784, %v839
      %v877 = vmul.f32 %v780, %v843
      %v878 = vmul.f32 %v784, %v843
      %v879 = vmul.f32 %v780, %v847
      %v880 = vmul.f32 %v784, %v847
      %v881 = vmul.f32 %v788, %v835
      %v882 = vmul.f32 %v792, %v835
      %v883 = vmul.f32 %v788, %v839
      %v884 = vmul.f32 %v792, %v839
      %v885 = vmul.f32 %v788, %v843
      %v886 = vmul.f32 %v792, %v843
      %v887 = vmul.f32 %v788, %v847
      %v888 = vmul.f32 %v792, %v847
      %v889 = vmul.f32 %v796, %v835
      %v890 = vmul.f32 %v800, %v835
      %v891 = vmul.f32 %v796, %v839
      %v892 = vmul.f32 %v800, %v839
      %v893 = vmul.f32 %v796, %v843
      %v894 = vmul.f32 %v800, %v843
      %v895 = vmul.f32 %v796, %v847
      %v896 = vmul.f32 %v800, %v847
      %v897 = vmul.f32 %v804, %v835
      %v898 = vmul.f32 %v808, %v835
      %v899 = vmul.f32 %v804, %v839
      %v900 = vmul.f32 %v808, %v839
      %v901 = vmul.f32 %v804, %v843
      %v902 = vmul.f32 %v808, %v843
      %v903 = vmul.f32 %v804, %v847
      %v904 = vmul.f32 %v808, %v847
      %v905 = vmul.f32 %v812, %v835
      %v906 = vmul.f32 %v816, %v835
      %v907 = vmul.f32 %v812, %v839
      %v908 = vmul.f32 %v816, %v839
      %v909 = vmul.f32 %v812, %v843
      %v910 = vmul.f32 %v816, %v843
      %v911 = vmul.f32 %v812, %v847
      %v912 = vmul.f32 %v816, %v847
      %v913 = vadd.f32 %v634, %v849
      %v914 = vadd.f32 %v635, %v850
      %v915 = vadd.f32 %v636, %v851
      %v916 = vadd.f32 %v637, %v852
      %v917 = vadd.f32 %v638, %v853
      %v918 = vadd.f32 %v639, %v854
      %v919 = vadd.f32 %v640, %v855
      %v920 = vadd.f32 %v641, %v856
      %v921 = vadd.f32 %v642, %v857
      %v922 = vadd.f32 %v643, %v858
      %v923 = vadd.f32 %v644, %v859
      %v924 = vadd.f32 %v645, %v860
      %v925 = vadd.f32 %v646, %v861
      %v926 = vadd.f32 %v647, %v862
      %v927 = vadd.f32 %v648, %v863
      %v928 = vadd.f32 %v649, %v864
      %v929 = vadd.f32 %v650, %v865
      %v930 = vadd.f32 %v651, %v866
      %v931 = vadd.f32 %v652, %v867
      %v932 = vadd.f32 %v653, %v868
      %v933 = vadd.f32 %v654, %v869
      %v934 = vadd.f32 %v655, %v870
      %v935 = vadd.f32 %v656, %v871
      %v936 = vadd.f32 %v657, %v872
      %v937 = vadd.f32 %v658, %v873
      %v938 = vadd.f32 %v659, %v874
      %v939 = vadd.f32 %v660, %v875
      %v940 = vadd.f32 %v661, %v876
      %v941 = vadd.f32 %v662, %v877
      %v942 = vadd.f32 %v663, %v878
      %v943 = vadd.f32 %v664, %v879
      %v944 = vadd.f32 %v665, %v880
      %v945 = vadd.f32 %v666, %v881
      %v946 = vadd.f32 %v667, %v882
      %v947 = vadd.f32 %v668, %v883
      %v948 = vadd.f32 %v669, %v884
      %v949 = vadd.f32 %v670, %v885
      %v950 = vadd.f32 %v671, %v886
      %v951 = vadd.f32 %v672, %v887
      %v952 = vadd.f32 %v673, %v888
      %v953 = vadd.f32 %v674, %v889
      %v954 = vadd.f32 %v675, %v890
      %v955 = vadd.f32 %v676, %v891
      %v956 = vadd.f32 %v677, %v892
      %v957 = vadd.f32 %v678, %v893
      %v958 = vadd.f32 %v679, %v894
      %v959 = vadd.f32 %v680, %v895
      %v960 = vadd.f32 %v681, %v896
      %v961 = vadd.f32 %v682, %v897
      %v962 = vadd.f32 %v683, %v898
      %v963 = vadd.f32 %v684, %v899
      %v964 = vadd.f32 %v685, %v900
      %v965 = vadd.f32 %v686, %v901
      %v966 = vadd.f32 %v687, %v902
      %v967 = vadd.f32 %v688, %v903
      %v968 = vadd.f32 %v689, %v904
      %v969 = vadd.f32 %v690, %v905
      %v970 = vadd.f32 %v691, %v906
      %v971 = vadd.f32 %v692, %v907
      %v972 = vadd.f32 %v693, %v908
      %v973 = vadd.f32 %v694, %v909
      %v974 = vadd.f32 %v695, %v910
      %v975 = vadd.f32 %v696, %v911
      %v976 = vadd.f32 %v697, %v912
      %v977 = vld [vmem:[%s191 + $0x18] sm:$0xff]
      %v978 = vunpack.c.l.bf16 %v977
      %v979 = vunpack.c.h.bf16 %v977
      %v982 = vcombine.low %v978, %v979
      %v983 = vcombine.high %v978, %v979
      %v985 = vunpack.c.l.s4 1966171168
      %v986 = vunpack.c.0.s8 %v985
      %v987 = vlaneseq
      %v988 = vshrl.u32 %v987, 7
      %v989 = vsub.s32 %v986, %v988
      %v990 = vrot.slane %v982, %v989
      %v992 = vunpack.c.l.s4 1966171168
      %v993 = vunpack.c.0.s8 %v992
      %v994 = vlaneseq
      %v995 = vshrl.u32 %v994, 7
      %v996 = vsub.s32 %v993, %v995
      %v997 = vrot.slane %v983, %v996
      %v998 = vcombine.high %v990, %v990
      %v999 = vcombine.high %v997, %v997
      %v1001 = vunpack.c.l.s4 1966171168
      %v1002 = vunpack.c.0.s8 %v1001
      %v1003 = vlaneseq
      %v1004 = vshrl.u32 %v1003, 7
      %v1005 = vsub.s32 %v1002, %v1004
      %v1006 = vrot.slane %v990, %v1005
      %v1008 = vunpack.c.l.s4 1966171168
      %v1009 = vunpack.c.0.s8 %v1008
      %v1010 = vlaneseq
      %v1011 = vshrl.u32 %v1010, 7
      %v1012 = vsub.s32 %v1009, %v1011
      %v1013 = vrot.slane %v997, %v1012
      %v1015 = vunpack.c.l.s4 1966171168
      %v1016 = vunpack.c.0.s8 %v1015
      %v1017 = vlaneseq
      %v1018 = vshrl.u32 %v1017, 7
      %v1019 = vsub.s32 %v1016, %v1018
      %v1020 = vrot.slane %v998, %v1019
      %v1022 = vunpack.c.l.s4 1966171168
      %v1023 = vunpack.c.0.s8 %v1022
      %v1024 = vlaneseq
      %v1025 = vshrl.u32 %v1024, 7
      %v1026 = vsub.s32 %v1023, %v1025
      %v1027 = vrot.slane %v999, %v1026
      %v1028 = vcombine.high %v1006, %v1006
      %v1029 = vcombine.high %v1013, %v1013
      %v1030 = vcombine.high %v1020, %v1020
      %v1031 = vcombine.high %v1027, %v1027
      %v1032 = vlaneseq
      %v1033 = vshrl.u32 %v1032, 7
      %v1034 = vsub.s32 0, %v1033
      %v1035 = vrot.slane %v1006, %v1034
      %v1036 = vlaneseq
      %v1037 = vshrl.u32 %v1036, 7
      %v1038 = vsub.s32 1, %v1037
      %v1039 = vrot.slane %v1006, %v1038
      %v1040 = vlaneseq
      %v1041 = vshrl.u32 %v1040, 7
      %v1042 = vsub.s32 0, %v1041
      %v1043 = vrot.slane %v1020, %v1042
      %v1044 = vlaneseq
      %v1045 = vshrl.u32 %v1044, 7
      %v1046 = vsub.s32 1, %v1045
      %v1047 = vrot.slane %v1020, %v1046
      %v1048 = vlaneseq
      %v1049 = vshrl.u32 %v1048, 7
      %v1050 = vsub.s32 0, %v1049
      %v1051 = vrot.slane %v1028, %v1050
      %v1052 = vlaneseq
      %v1053 = vshrl.u32 %v1052, 7
      %v1054 = vsub.s32 1, %v1053
      %v1055 = vrot.slane %v1028, %v1054
      %v1056 = vlaneseq
      %v1057 = vshrl.u32 %v1056, 7
      %v1058 = vsub.s32 0, %v1057
      %v1059 = vrot.slane %v1030, %v1058
      %v1060 = vlaneseq
      %v1061 = vshrl.u32 %v1060, 7
      %v1062 = vsub.s32 1, %v1061
      %v1063 = vrot.slane %v1030, %v1062
      %v1064 = vlaneseq
      %v1065 = vshrl.u32 %v1064, 7
      %v1066 = vsub.s32 0, %v1065
      %v1067 = vrot.slane %v1013, %v1066
      %v1068 = vlaneseq
      %v1069 = vshrl.u32 %v1068, 7
      %v1070 = vsub.s32 1, %v1069
      %v1071 = vrot.slane %v1013, %v1070
      %v1072 = vlaneseq
      %v1073 = vshrl.u32 %v1072, 7
      %v1074 = vsub.s32 0, %v1073
      %v1075 = vrot.slane %v1027, %v1074
      %v1076 = vlaneseq
      %v1077 = vshrl.u32 %v1076, 7
      %v1078 = vsub.s32 1, %v1077
      %v1079 = vrot.slane %v1027, %v1078
      %v1080 = vlaneseq
      %v1081 = vshrl.u32 %v1080, 7
      %v1082 = vsub.s32 0, %v1081
      %v1083 = vrot.slane %v1029, %v1082
      %v1084 = vlaneseq
      %v1085 = vshrl.u32 %v1084, 7
      %v1086 = vsub.s32 1, %v1085
      %v1087 = vrot.slane %v1029, %v1086
      %v1088 = vlaneseq
      %v1089 = vshrl.u32 %v1088, 7
      %v1090 = vsub.s32 0, %v1089
      %v1091 = vrot.slane %v1031, %v1090
      %v1092 = vlaneseq
      %v1093 = vshrl.u32 %v1092, 7
      %v1094 = vsub.s32 1, %v1093
      %v1095 = vrot.slane %v1031, %v1094
      %1112 = vset.pattern.permute.xlu0 3
      %1113 = vperm.xlu0 %1112, %v196
      %v1114 = vpop.permute.xlu0 %1113
      %1116 = vset.pattern.permute.xlu0 3
      %1117 = vperm.xlu0 %1116, %v197
      %v1118 = vpop.permute.xlu0 %1117
      %1120 = vset.pattern.permute.xlu0 3
      %1121 = vperm.xlu0 %1120, %v198
      %v1122 = vpop.permute.xlu0 %1121
      %1124 = vset.pattern.permute.xlu0 3
      %1125 = vperm.xlu0 %1124, %v199
      %v1126 = vpop.permute.xlu0 %1125
      %v1128 = vmul.f32 %v1035, %v1114
      %v1129 = vmul.f32 %v1039, %v1114
      %v1130 = vmul.f32 %v1035, %v1118
      %v1131 = vmul.f32 %v1039, %v1118
      %v1132 = vmul.f32 %v1035, %v1122
      %v1133 = vmul.f32 %v1039, %v1122
      %v1134 = vmul.f32 %v1035, %v1126
      %v1135 = vmul.f32 %v1039, %v1126
      %v1136 = vmul.f32 %v1043, %v1114
      %v1137 = vmul.f32 %v1047, %v1114
      %v1138 = vmul.f32 %v1043, %v1118
      %v1139 = vmul.f32 %v1047, %v1118
      %v1140 = vmul.f32 %v1043, %v1122
      %v1141 = vmul.f32 %v1047, %v1122
      %v1142 = vmul.f32 %v1043, %v1126
      %v1143 = vmul.f32 %v1047, %v1126
      %v1144 = vmul.f32 %v1051, %v1114
      %v1145 = vmul.f32 %v1055, %v1114
      %v1146 = vmul.f32 %v1051, %v1118
      %v1147 = vmul.f32 %v1055, %v1118
      %v1148 = vmul.f32 %v1051, %v1122
      %v1149 = vmul.f32 %v1055, %v1122
      %v1150 = vmul.f32 %v1051, %v1126
      %v1151 = vmul.f32 %v1055, %v1126
      %v1152 = vmul.f32 %v1059, %v1114
      %v1153 = vmul.f32 %v1063, %v1114
      %v1154 = vmul.f32 %v1059, %v1118
      %v1155 = vmul.f32 %v1063, %v1118
      %v1156 = vmul.f32 %v1059, %v1122
      %v1157 = vmul.f32 %v1063, %v1122
      %v1158 = vmul.f32 %v1059, %v1126
      %v1159 = vmul.f32 %v1063, %v1126
      %v1160 = vmul.f32 %v1067, %v1114
      %v1161 = vmul.f32 %v1071, %v1114
      %v1162 = vmul.f32 %v1067, %v1118
      %v1163 = vmul.f32 %v1071, %v1118
      %v1164 = vmul.f32 %v1067, %v1122
      %v1165 = vmul.f32 %v1071, %v1122
      %v1166 = vmul.f32 %v1067, %v1126
      %v1167 = vmul.f32 %v1071, %v1126
      %v1168 = vmul.f32 %v1075, %v1114
      %v1169 = vmul.f32 %v1079, %v1114
      %v1170 = vmul.f32 %v1075, %v1118
      %v1171 = vmul.f32 %v1079, %v1118
      %v1172 = vmul.f32 %v1075, %v1122
      %v1173 = vmul.f32 %v1079, %v1122
      %v1174 = vmul.f32 %v1075, %v1126
      %v1175 = vmul.f32 %v1079, %v1126
      %v1176 = vmul.f32 %v1083, %v1114
      %v1177 = vmul.f32 %v1087, %v1114
      %v1178 = vmul.f32 %v1083, %v1118
      %v1179 = vmul.f32 %v1087, %v1118
      %v1180 = vmul.f32 %v1083, %v1122
      %v1181 = vmul.f32 %v1087, %v1122
      %v1182 = vmul.f32 %v1083, %v1126
      %v1183 = vmul.f32 %v1087, %v1126
      %v1184 = vmul.f32 %v1091, %v1114
      %v1185 = vmul.f32 %v1095, %v1114
      %v1186 = vmul.f32 %v1091, %v1118
      %v1187 = vmul.f32 %v1095, %v1118
      %v1188 = vmul.f32 %v1091, %v1122
      %v1189 = vmul.f32 %v1095, %v1122
      %v1190 = vmul.f32 %v1091, %v1126
      %v1191 = vmul.f32 %v1095, %v1126
      %v1192 = vadd.f32 %v913, %v1128
      %v1193 = vadd.f32 %v914, %v1129
      %v1194 = vadd.f32 %v915, %v1130
      %v1195 = vadd.f32 %v916, %v1131
      %v1196 = vadd.f32 %v917, %v1132
      %v1197 = vadd.f32 %v918, %v1133
      %v1198 = vadd.f32 %v919, %v1134
      %v1199 = vadd.f32 %v920, %v1135
      %v1200 = vadd.f32 %v921, %v1136
      %v1201 = vadd.f32 %v922, %v1137
      %v1202 = vadd.f32 %v923, %v1138
      %v1203 = vadd.f32 %v924, %v1139
      %v1204 = vadd.f32 %v925, %v1140
      %v1205 = vadd.f32 %v926, %v1141
      %v1206 = vadd.f32 %v927, %v1142
      %v1207 = vadd.f32 %v928, %v1143
      %v1208 = vadd.f32 %v929, %v1144
      %v1209 = vadd.f32 %v930, %v1145
      %v1210 = vadd.f32 %v931, %v1146
      %v1211 = vadd.f32 %v932, %v1147
      %v1212 = vadd.f32 %v933, %v1148
      %v1213 = vadd.f32 %v934, %v1149
      %v1214 = vadd.f32 %v935, %v1150
      %v1215 = vadd.f32 %v936, %v1151
      %v1216 = vadd.f32 %v937, %v1152
      %v1217 = vadd.f32 %v938, %v1153
      %v1218 = vadd.f32 %v939, %v1154
      %v1219 = vadd.f32 %v940, %v1155
      %v1220 = vadd.f32 %v941, %v1156
      %v1221 = vadd.f32 %v942, %v1157
      %v1222 = vadd.f32 %v943, %v1158
      %v1223 = vadd.f32 %v944, %v1159
      %v1224 = vadd.f32 %v945, %v1160
      %v1225 = vadd.f32 %v946, %v1161
      %v1226 = vadd.f32 %v947, %v1162
      %v1227 = vadd.f32 %v948, %v1163
      %v1228 = vadd.f32 %v949, %v1164
      %v1229 = vadd.f32 %v950, %v1165
      %v1230 = vadd.f32 %v951, %v1166
      %v1231 = vadd.f32 %v952, %v1167
      %v1232 = vadd.f32 %v953, %v1168
      %v1233 = vadd.f32 %v954, %v1169
      %v1234 = vadd.f32 %v955, %v1170
      %v1235 = vadd.f32 %v956, %v1171
      %v1236 = vadd.f32 %v957, %v1172
      %v1237 = vadd.f32 %v958, %v1173
      %v1238 = vadd.f32 %v959, %v1174
      %v1239 = vadd.f32 %v960, %v1175
      %v1240 = vadd.f32 %v961, %v1176
      %v1241 = vadd.f32 %v962, %v1177
      %v1242 = vadd.f32 %v963, %v1178
      %v1243 = vadd.f32 %v964, %v1179
      %v1244 = vadd.f32 %v965, %v1180
      %v1245 = vadd.f32 %v966, %v1181
      %v1246 = vadd.f32 %v967, %v1182
      %v1247 = vadd.f32 %v968, %v1183
      %v1248 = vadd.f32 %v969, %v1184
      %v1249 = vadd.f32 %v970, %v1185
      %v1250 = vadd.f32 %v971, %v1186
      %v1251 = vadd.f32 %v972, %v1187
      %v1252 = vadd.f32 %v973, %v1188
      %v1253 = vadd.f32 %v974, %v1189
      %v1254 = vadd.f32 %v975, %v1190
      %v1255 = vadd.f32 %v976, %v1191
      %v1256 = vmax.f32 %v1192, 0.0
      %v1257 = vmax.f32 %v1193, 0.0
      %v1258 = vmax.f32 %v1194, 0.0
      %v1259 = vmax.f32 %v1195, 0.0
      %v1260 = vmax.f32 %v1196, 0.0
      %v1261 = vmax.f32 %v1197, 0.0
      %v1262 = vmax.f32 %v1198, 0.0
      %v1263 = vmax.f32 %v1199, 0.0
      %v1264 = vmax.f32 %v1200, 0.0
      %v1265 = vmax.f32 %v1201, 0.0
      %v1266 = vmax.f32 %v1202, 0.0
      %v1267 = vmax.f32 %v1203, 0.0
      %v1268 = vmax.f32 %v1204, 0.0
      %v1269 = vmax.f32 %v1205, 0.0
      %v1270 = vmax.f32 %v1206, 0.0
      %v1271 = vmax.f32 %v1207, 0.0
      %v1272 = vmax.f32 %v1208, 0.0
      %v1273 = vmax.f32 %v1209, 0.0
      %v1274 = vmax.f32 %v1210, 0.0
      %v1275 = vmax.f32 %v1211, 0.0
      %v1276 = vmax.f32 %v1212, 0.0
      %v1277 = vmax.f32 %v1213, 0.0
      %v1278 = vmax.f32 %v1214, 0.0
      %v1279 = vmax.f32 %v1215, 0.0
      %v1280 = vmax.f32 %v1216, 0.0
      %v1281 = vmax.f32 %v1217, 0.0
      %v1282 = vmax.f32 %v1218, 0.0
      %v1283 = vmax.f32 %v1219, 0.0
      %v1284 = vmax.f32 %v1220, 0.0
      %v1285 = vmax.f32 %v1221, 0.0
      %v1286 = vmax.f32 %v1222, 0.0
      %v1287 = vmax.f32 %v1223, 0.0
      %v1288 = vmax.f32 %v1224, 0.0
      %v1289 = vmax.f32 %v1225, 0.0
      %v1290 = vmax.f32 %v1226, 0.0
      %v1291 = vmax.f32 %v1227, 0.0
      %v1292 = vmax.f32 %v1228, 0.0
      %v1293 = vmax.f32 %v1229, 0.0
      %v1294 = vmax.f32 %v1230, 0.0
      %v1295 = vmax.f32 %v1231, 0.0
      %v1296 = vmax.f32 %v1232, 0.0
      %v1297 = vmax.f32 %v1233, 0.0
      %v1298 = vmax.f32 %v1234, 0.0
      %v1299 = vmax.f32 %v1235, 0.0
      %v1300 = vmax.f32 %v1236, 0.0
      %v1301 = vmax.f32 %v1237, 0.0
      %v1302 = vmax.f32 %v1238, 0.0
      %v1303 = vmax.f32 %v1239, 0.0
      %v1304 = vmax.f32 %v1240, 0.0
      %v1305 = vmax.f32 %v1241, 0.0
      %v1306 = vmax.f32 %v1242, 0.0
      %v1307 = vmax.f32 %v1243, 0.0
      %v1308 = vmax.f32 %v1244, 0.0
      %v1309 = vmax.f32 %v1245, 0.0
      %v1310 = vmax.f32 %v1246, 0.0
      %v1311 = vmax.f32 %v1247, 0.0
      %v1312 = vmax.f32 %v1248, 0.0
      %v1313 = vmax.f32 %v1249, 0.0
      %v1314 = vmax.f32 %v1250, 0.0
      %v1315 = vmax.f32 %v1251, 0.0
      %v1316 = vmax.f32 %v1252, 0.0
      %v1317 = vmax.f32 %v1253, 0.0
      %v1318 = vmax.f32 %v1254, 0.0
      %v1319 = vmax.f32 %v1255, 0.0
      %v1320 = vadd.f32 %v1256, %v1257
      %1321 = vadd.xlane.f32.xlu0 %v1320
      %v1322 = vpop.xlane.xlu0 %1321
      %v1323 = vadd.f32 %v1258, %v1259
      %1324 = vadd.xlane.f32.xlu0 %v1323
      %v1325 = vpop.xlane.xlu0 %1324
      %v1326 = vadd.f32 %v1260, %v1261
      %1327 = vadd.xlane.f32.xlu0 %v1326
      %v1328 = vpop.xlane.xlu0 %1327
      %v1329 = vadd.f32 %v1262, %v1263
      %1330 = vadd.xlane.f32.xlu0 %v1329
      %v1331 = vpop.xlane.xlu0 %1330
      %v1332 = vadd.f32 %v1264, %v1265
      %1333 = vadd.xlane.f32.xlu0 %v1332
      %v1334 = vpop.xlane.xlu0 %1333
      %v1335 = vadd.f32 %v1266, %v1267
      %1336 = vadd.xlane.f32.xlu0 %v1335
      %v1337 = vpop.xlane.xlu0 %1336
      %v1338 = vadd.f32 %v1268, %v1269
      %1339 = vadd.xlane.f32.xlu0 %v1338
      %v1340 = vpop.xlane.xlu0 %1339
      %v1341 = vadd.f32 %v1270, %v1271
      %1342 = vadd.xlane.f32.xlu0 %v1341
      %v1343 = vpop.xlane.xlu0 %1342
      %v1344 = vadd.f32 %v1272, %v1273
      %1345 = vadd.xlane.f32.xlu0 %v1344
      %v1346 = vpop.xlane.xlu0 %1345
      %v1347 = vadd.f32 %v1274, %v1275
      %1348 = vadd.xlane.f32.xlu0 %v1347
      %v1349 = vpop.xlane.xlu0 %1348
      %v1350 = vadd.f32 %v1276, %v1277
      %1351 = vadd.xlane.f32.xlu0 %v1350
      %v1352 = vpop.xlane.xlu0 %1351
      %v1353 = vadd.f32 %v1278, %v1279
      %1354 = vadd.xlane.f32.xlu0 %v1353
      %v1355 = vpop.xlane.xlu0 %1354
      %v1356 = vadd.f32 %v1280, %v1281
      %1357 = vadd.xlane.f32.xlu0 %v1356
      %v1358 = vpop.xlane.xlu0 %1357
      %v1359 = vadd.f32 %v1282, %v1283
      %1360 = vadd.xlane.f32.xlu0 %v1359
      %v1361 = vpop.xlane.xlu0 %1360
      %v1362 = vadd.f32 %v1284, %v1285
      %1363 = vadd.xlane.f32.xlu0 %v1362
      %v1364 = vpop.xlane.xlu0 %1363
      %v1365 = vadd.f32 %v1286, %v1287
      %1366 = vadd.xlane.f32.xlu0 %v1365
      %v1367 = vpop.xlane.xlu0 %1366
      %v1368 = vadd.f32 %v1288, %v1289
      %1369 = vadd.xlane.f32.xlu0 %v1368
      %v1370 = vpop.xlane.xlu0 %1369
      %v1371 = vadd.f32 %v1290, %v1291
      %1372 = vadd.xlane.f32.xlu0 %v1371
      %v1373 = vpop.xlane.xlu0 %1372
      %v1374 = vadd.f32 %v1292, %v1293
      %1375 = vadd.xlane.f32.xlu0 %v1374
      %v1376 = vpop.xlane.xlu0 %1375
      %v1377 = vadd.f32 %v1294, %v1295
      %1378 = vadd.xlane.f32.xlu0 %v1377
      %v1379 = vpop.xlane.xlu0 %1378
      %v1380 = vadd.f32 %v1296, %v1297
      %1381 = vadd.xlane.f32.xlu0 %v1380
      %v1382 = vpop.xlane.xlu0 %1381
      %v1383 = vadd.f32 %v1298, %v1299
      %1384 = vadd.xlane.f32.xlu0 %v1383
      %v1385 = vpop.xlane.xlu0 %1384
      %v1386 = vadd.f32 %v1300, %v1301
      %1387 = vadd.xlane.f32.xlu0 %v1386
      %v1388 = vpop.xlane.xlu0 %1387
      %v1389 = vadd.f32 %v1302, %v1303
      %1390 = vadd.xlane.f32.xlu0 %v1389
      %v1391 = vpop.xlane.xlu0 %1390
      %v1392 = vadd.f32 %v1304, %v1305
      %1393 = vadd.xlane.f32.xlu0 %v1392
      %v1394 = vpop.xlane.xlu0 %1393
      %v1395 = vadd.f32 %v1306, %v1307
      %1396 = vadd.xlane.f32.xlu0 %v1395
      %v1397 = vpop.xlane.xlu0 %1396
      %v1398 = vadd.f32 %v1308, %v1309
      %1399 = vadd.xlane.f32.xlu0 %v1398
      %v1400 = vpop.xlane.xlu0 %1399
      %v1401 = vadd.f32 %v1310, %v1311
      %1402 = vadd.xlane.f32.xlu0 %v1401
      %v1403 = vpop.xlane.xlu0 %1402
      %v1404 = vadd.f32 %v1312, %v1313
      %1405 = vadd.xlane.f32.xlu0 %v1404
      %v1406 = vpop.xlane.xlu0 %1405
      %v1407 = vadd.f32 %v1314, %v1315
      %1408 = vadd.xlane.f32.xlu0 %v1407
      %v1409 = vpop.xlane.xlu0 %1408
      %v1410 = vadd.f32 %v1316, %v1317
      %1411 = vadd.xlane.f32.xlu0 %v1410
      %v1412 = vpop.xlane.xlu0 %1411
      %v1413 = vadd.f32 %v1318, %v1319
      %1414 = vadd.xlane.f32.xlu0 %v1413
      %v1415 = vpop.xlane.xlu0 %1414
      %v1416 = vadd.f32 %v1322, 0.0
      %v1417 = vadd.f32 %v1325, 0.0
      %v1418 = vadd.f32 %v1328, 0.0
      %v1419 = vadd.f32 %v1331, 0.0
      %v1420 = vadd.f32 %v1334, 0.0
      %v1421 = vadd.f32 %v1337, 0.0
      %v1422 = vadd.f32 %v1340, 0.0
      %v1423 = vadd.f32 %v1343, 0.0
      %v1424 = vadd.f32 %v1346, 0.0
      %v1425 = vadd.f32 %v1349, 0.0
      %v1426 = vadd.f32 %v1352, 0.0
      %v1427 = vadd.f32 %v1355, 0.0
      %v1428 = vadd.f32 %v1358, 0.0
      %v1429 = vadd.f32 %v1361, 0.0
      %v1430 = vadd.f32 %v1364, 0.0
      %v1431 = vadd.f32 %v1367, 0.0
      %v1432 = vadd.f32 %v1370, 0.0
      %v1433 = vadd.f32 %v1373, 0.0
      %v1434 = vadd.f32 %v1376, 0.0
      %v1435 = vadd.f32 %v1379, 0.0
      %v1436 = vadd.f32 %v1382, 0.0
      %v1437 = vadd.f32 %v1385, 0.0
      %v1438 = vadd.f32 %v1388, 0.0
      %v1439 = vadd.f32 %v1391, 0.0
      %v1440 = vadd.f32 %v1394, 0.0
      %v1441 = vadd.f32 %v1397, 0.0
      %v1442 = vadd.f32 %v1400, 0.0
      %v1443 = vadd.f32 %v1403, 0.0
      %v1444 = vadd.f32 %v1406, 0.0
      %v1445 = vadd.f32 %v1409, 0.0
      %v1446 = vadd.f32 %v1412, 0.0
      %v1447 = vadd.f32 %v1415, 0.0
      %v1448 = vld [vmem:[%s2] sm:$0xff]
      %v1449 = vld [vmem:[%s2 + $0x8] sm:$0xff]
      %v1450 = vld [vmem:[%s2 + $0x10] sm:$0xff]
      %v1451 = vld [vmem:[%s2 + $0x18] sm:$0xff]
      %v1452 = vld [vmem:[%s3] sm:$0x1]
      %v1454 = vlaneseq
      %v1455 = vshrl.u32 %v1454, 7
      %v1456 = vsub.s32 0, %v1455
      %v1457 = vrot.slane %v1452, %v1456
      %v1491 = vlaneseq
      %v1492 = vand.u32 %v1491, 127
      %v1493 = vlaneseq
      %v1494 = vshrl.u32 %v1493, 7
      %v1495 = vsub.s32 %v1492, %v1494
      %v1496 = vrot.slane %v1416, %v1495
      %v1497 = vadd.s32 %v1492, 4294967288
      %v1498 = vlaneseq
      %v1499 = vshrl.u32 %v1498, 7
      %v1500 = vsub.s32 %v1497, %v1499
      %v1501 = vrot.slane %v1417, %v1500
      %vm1502 = vcmask 130112
      %v1503 = vsel %vm1502, %v1501, %v1496
      %v1504 = vadd.s32 %v1492, 4294967280
      %v1505 = vlaneseq
      %v1506 = vshrl.u32 %v1505, 7
      %v1507 = vsub.s32 %v1504, %v1506
      %v1508 = vrot.slane %v1418, %v1507
      %vm1509 = vcmask 195712
      %v1510 = vsel %vm1509, %v1508, %v1503
      %v1511 = vadd.s32 %v1492, 4294967272
      %v1512 = vlaneseq
      %v1513 = vshrl.u32 %v1512, 7
      %v1514 = vsub.s32 %v1511, %v1513
      %v1515 = vrot.slane %v1419, %v1514
      %vm1516 = vcmask 261312
      %v1517 = vsel %vm1516, %v1515, %v1510
      %v1518 = vlaneseq
      %v1519 = vshrl.u32 %v1518, 7
      %v1520 = vsub.s32 %v1492, %v1519
      %v1521 = vrot.slane %v1420, %v1520
      %v1522 = vlaneseq
      %v1523 = vshrl.u32 %v1522, 7
      %v1524 = vsub.s32 %v1497, %v1523
      %v1525 = vrot.slane %v1421, %v1524
      %v1526 = vsel %vm1502, %v1525, %v1521
      %v1527 = vlaneseq
      %v1528 = vshrl.u32 %v1527, 7
      %v1529 = vsub.s32 %v1504, %v1528
      %v1530 = vrot.slane %v1422, %v1529
      %v1531 = vsel %vm1509, %v1530, %v1526
      %v1532 = vlaneseq
      %v1533 = vshrl.u32 %v1532, 7
      %v1534 = vsub.s32 %v1511, %v1533
      %v1535 = vrot.slane %v1423, %v1534
      %v1536 = vsel %vm1516, %v1535, %v1531
      %v1537 = vlaneseq
      %v1538 = vshrl.u32 %v1537, 7
      %v1539 = vsub.s32 %v1492, %v1538
      %v1540 = vrot.slane %v1424, %v1539
      %v1541 = vlaneseq
      %v1542 = vshrl.u32 %v1541, 7
      %v1543 = vsub.s32 %v1497, %v1542
      %v1544 = vrot.slane %v1425, %v1543
      %v1545 = vsel %vm1502, %v1544, %v1540
      %v1546 = vlaneseq
      %v1547 = vshrl.u32 %v1546, 7
      %v1548 = vsub.s32 %v1504, %v1547
      %v1549 = vrot.slane %v1426, %v1548
      %v1550 = vsel %vm1509, %v1549, %v1545
      %v1551 = vlaneseq
      %v1552 = vshrl.u32 %v1551, 7
      %v1553 = vsub.s32 %v1511, %v1552
      %v1554 = vrot.slane %v1427, %v1553
      %v1555 = vsel %vm1516, %v1554, %v1550
      %v1556 = vlaneseq
      %v1557 = vshrl.u32 %v1556, 7
      %v1558 = vsub.s32 %v1492, %v1557
      %v1559 = vrot.slane %v1428, %v1558
      %v1560 = vlaneseq
      %v1561 = vshrl.u32 %v1560, 7
      %v1562 = vsub.s32 %v1497, %v1561
      %v1563 = vrot.slane %v1429, %v1562
      %v1564 = vsel %vm1502, %v1563, %v1559
      %v1565 = vlaneseq
      %v1566 = vshrl.u32 %v1565, 7
      %v1567 = vsub.s32 %v1504, %v1566
      %v1568 = vrot.slane %v1430, %v1567
      %v1569 = vsel %vm1509, %v1568, %v1564
      %v1570 = vlaneseq
      %v1571 = vshrl.u32 %v1570, 7
      %v1572 = vsub.s32 %v1511, %v1571
      %v1573 = vrot.slane %v1431, %v1572
      %v1574 = vsel %vm1516, %v1573, %v1569
      %v1575 = vlaneseq
      %v1576 = vshrl.u32 %v1575, 7
      %v1577 = vsub.s32 %v1492, %v1576
      %v1578 = vrot.slane %v1432, %v1577
      %v1579 = vlaneseq
      %v1580 = vshrl.u32 %v1579, 7
      %v1581 = vsub.s32 %v1497, %v1580
      %v1582 = vrot.slane %v1433, %v1581
      %v1583 = vsel %vm1502, %v1582, %v1578
      %v1584 = vlaneseq
      %v1585 = vshrl.u32 %v1584, 7
      %v1586 = vsub.s32 %v1504, %v1585
      %v1587 = vrot.slane %v1434, %v1586
      %v1588 = vsel %vm1509, %v1587, %v1583
      %v1589 = vlaneseq
      %v1590 = vshrl.u32 %v1589, 7
      %v1591 = vsub.s32 %v1511, %v1590
      %v1592 = vrot.slane %v1435, %v1591
      %v1593 = vsel %vm1516, %v1592, %v1588
      %v1594 = vlaneseq
      %v1595 = vshrl.u32 %v1594, 7
      %v1596 = vsub.s32 %v1492, %v1595
      %v1597 = vrot.slane %v1436, %v1596
      %v1598 = vlaneseq
      %v1599 = vshrl.u32 %v1598, 7
      %v1600 = vsub.s32 %v1497, %v1599
      %v1601 = vrot.slane %v1437, %v1600
      %v1602 = vsel %vm1502, %v1601, %v1597
      %v1603 = vlaneseq
      %v1604 = vshrl.u32 %v1603, 7
      %v1605 = vsub.s32 %v1504, %v1604
      %v1606 = vrot.slane %v1438, %v1605
      %v1607 = vsel %vm1509, %v1606, %v1602
      %v1608 = vlaneseq
      %v1609 = vshrl.u32 %v1608, 7
      %v1610 = vsub.s32 %v1511, %v1609
      %v1611 = vrot.slane %v1439, %v1610
      %v1612 = vsel %vm1516, %v1611, %v1607
      %v1613 = vlaneseq
      %v1614 = vshrl.u32 %v1613, 7
      %v1615 = vsub.s32 %v1492, %v1614
      %v1616 = vrot.slane %v1440, %v1615
      %v1617 = vlaneseq
      %v1618 = vshrl.u32 %v1617, 7
      %v1619 = vsub.s32 %v1497, %v1618
      %v1620 = vrot.slane %v1441, %v1619
      %v1621 = vsel %vm1502, %v1620, %v1616
      %v1622 = vlaneseq
      %v1623 = vshrl.u32 %v1622, 7
      %v1624 = vsub.s32 %v1504, %v1623
      %v1625 = vrot.slane %v1442, %v1624
      %v1626 = vsel %vm1509, %v1625, %v1621
      %v1627 = vlaneseq
      %v1628 = vshrl.u32 %v1627, 7
      %v1629 = vsub.s32 %v1511, %v1628
      %v1630 = vrot.slane %v1443, %v1629
      %v1631 = vsel %vm1516, %v1630, %v1626
      %v1632 = vlaneseq
      %v1633 = vshrl.u32 %v1632, 7
      %v1634 = vsub.s32 %v1492, %v1633
      %v1635 = vrot.slane %v1444, %v1634
      %v1636 = vlaneseq
      %v1637 = vshrl.u32 %v1636, 7
      %v1638 = vsub.s32 %v1497, %v1637
      %v1639 = vrot.slane %v1445, %v1638
      %v1640 = vsel %vm1502, %v1639, %v1635
      %v1641 = vlaneseq
      %v1642 = vshrl.u32 %v1641, 7
      %v1643 = vsub.s32 %v1504, %v1642
      %v1644 = vrot.slane %v1446, %v1643
      %v1645 = vsel %vm1509, %v1644, %v1640
      %v1646 = vlaneseq
      %v1647 = vshrl.u32 %v1646, 7
      %v1648 = vsub.s32 %v1511, %v1647
      %v1649 = vrot.slane %v1447, %v1648
      %v1650 = vsel %vm1516, %v1649, %v1645
      %vm1651 = vcmask 1041409
      %v1652 = vsel %vm1651, %v1536, %v1517
      %vm1653 = vcmask 1042434
      %v1654 = vsel %vm1653, %v1555, %v1652
      %vm1655 = vcmask 1043459
      %v1656 = vsel %vm1655, %v1574, %v1654
      %vm1657 = vcmask 1044484
      %v1658 = vsel %vm1657, %v1593, %v1656
      %vm1659 = vcmask 1045509
      %v1660 = vsel %vm1659, %v1612, %v1658
      %vm1661 = vcmask 1046534
      %v1662 = vsel %vm1661, %v1631, %v1660
      %vm1663 = vcmask 1047559
      %v1664 = vsel %vm1663, %v1650, %v1662
      %vm1665 = vcmask 261120
      %v1666 = vsel %vm1665, %v1664, 0
      %1668 = vmatprep.subr.mxu0 0.0
      %1669 = vmatpush1.msra.mxu0 %v1448
      %1670 = vmatprep.subr.mxu0 0.0
      %1671 = vmatpush1.msra.mxu0 %v1449
      %1672 = vmatprep.subr.mxu0 0.0
      %1673 = vmatpush1.msra.mxu0 %v1450
      %1674 = vmatprep.subr.mxu0 0.0
      %1675 = vmatpush1.msra.mxu0 %v1451
      %1676 = vmatprep.subr.mxu0 0.0
      %1677 = vmatpush1.msra.mxu0 0.0
      %1678 = vmatprep.subr.mxu0 0.0
      %1679 = vmatpush1.msra.mxu0 0.0
      %1680 = vmatprep.subr.mxu0 0.0
      %1681 = vmatpush1.msra.mxu0 0.0
      %1682 = vmatprep.subr.mxu0 0.0
      %1683 = vmatpush1.msra.mxu0 0.0
      %1684 = vmatprep.subr.mxu0 0.0
      %1685 = vmatpush1.msra.mxu0 0.0
      %1686 = vmatprep.subr.mxu0 0.0
      %1687 = vmatpush1.msra.mxu0 0.0
      %1688 = vmatprep.subr.mxu0 0.0
      %1689 = vmatpush1.msra.mxu0 0.0
      %1690 = vmatprep.subr.mxu0 0.0
      %1691 = vmatpush1.msra.mxu0 0.0
      %1692 = vmatprep.subr.mxu0 0.0
      %1693 = vmatpush1.msra.mxu0 0.0
      %1694 = vmatprep.subr.mxu0 0.0
      %1695 = vmatpush1.msra.mxu0 0.0
      %1696 = vmatprep.subr.mxu0 0.0
      %1697 = vmatpush1.msra.mxu0 0.0
      %1698 = vmatprep.subr.mxu0 0.0
      %1699 = vmatpush1.msra.mxu0 0.0
      %1700 = vmatprep.subr.mxu0 0.0
      %1701 = vmatpush1.msra.mxu0 0.0
      %1702 = vmatprep.subr.mxu0 0.0
      %1703 = vmatpush1.msra.mxu0 0.0
      %1704 = vmatprep.subr.mxu0 0.0
      %1705 = vmatpush1.msra.mxu0 0.0
      %1706 = vmatprep.subr.mxu0 0.0
      %1707 = vmatpush1.msra.mxu0 0.0
      %1708 = vmatprep.subr.mxu0 0.0
      %1709 = vmatpush1.msra.mxu0 0.0
      %1710 = vmatprep.subr.mxu0 0.0
      %1711 = vmatpush1.msra.mxu0 0.0
      %1712 = vmatprep.subr.mxu0 0.0
      %1713 = vmatpush1.msra.mxu0 0.0
      %1714 = vmatprep.subr.mxu0 0.0
      %1715 = vmatpush1.msra.mxu0 0.0
      %1716 = vmatprep.subr.mxu0 0.0
      %1717 = vmatpush1.msra.mxu0 0.0
      %1718 = vmatprep.subr.mxu0 0.0
      %1719 = vmatpush1.msra.mxu0 0.0
      %1720 = vmatprep.subr.mxu0 0.0
      %1721 = vmatpush1.msra.mxu0 0.0
      %1722 = vmatprep.subr.mxu0 0.0
      %1723 = vmatpush1.msra.mxu0 0.0
      %1724 = vmatprep.subr.mxu0 0.0
      %1725 = vmatpush1.msra.mxu0 0.0
      %1726 = vmatprep.subr.mxu0 0.0
      %1727 = vmatpush1.msra.mxu0 0.0
      %1728 = vmatprep.subr.mxu0 0.0
      %1729 = vmatpush1.msra.mxu0 0.0
      %1730 = vmatprep.subr.mxu0 0.0
      %1731 = vmatpush1.msra.mxu0 0.0
      %1732 = vmatprep.mubr.f32.mxu0 0.0
      %1733 = vmatmul.mubr.f32.gmra.mrb[0].mxu0 %v1666
      %v1734 = vpop.f32.mrb[0].mxu0
      %v1735 = vadd.f32 %v1457, %v1734
      %v1736 = vpop.f32.mrb[0].mxu0
      %1737 = vdwg.mxu0
      %1738 = vst [vmem:[%s195] sm:$0xff] %v1735
      %p1739 = scmp.lt.s32.totalorder %s15, 1
      %s1740 = scalar_select %p1739, %s15, 1
      %s1741 = smul.addr %s1740, 8
      %s1742 = scalar_lea.vmem %s4, %s1741
      // Predicated region
      $region37: #{fgsbir_fused_forward.2} parent=35 // pred_check
        %p1743 = pneg %p122
      $region38: #{fgsbir_fused_forward.2} parent=35 // pred_check_branch
        %1745 = sbr.rel (%p1743) target = $region40
      $region39: #{fgsbir_fused_forward.2} parent=35 // pred_region
        _
      $region40: #{fgsbir_fused_forward.2} parent=35 // pred_fallthru
        _
    $region36: #{fgsbir_fused_forward.2} parent=5 // pred_fallthru
      _
    %p1746 = scmp.le.s32.totalorder 2, %s10
    // Predicated region
    $region41: #{fgsbir_fused_forward.2} parent=5 // pred_check
      %p1747 = pneg %p1746
    $region42: #{fgsbir_fused_forward.2} parent=5 // pred_check_branch
      %1749 = sbr.rel (%p1747) target = $region44
    $region43: #{fgsbir_fused_forward.2} parent=5 // pred_region
      %s1750 = ssub.s32 %s10, 2
      // Predicated region
      $region45: #{fgsbir_fused_forward.2} parent=43 // pred_check
        %p1751 = pneg %p128
      $region46: #{fgsbir_fused_forward.2} parent=43 // pred_check_branch
        %1753 = sbr.rel (%p1751) target = $region48
      $region47: #{fgsbir_fused_forward.2} parent=43 // pred_region
        %p1754 = scmp.lt.s32.totalorder %s16, 1
        %s1755 = scalar_select %p1754, %s16, 1
        %s1756 = smul.addr %s1755, 8
        %s1757 = scalar_lea.vmem %s4, %s1756
      $region48: #{fgsbir_fused_forward.2} parent=43 // pred_fallthru
        _
    $region44: #{fgsbir_fused_forward.2} parent=5 // pred_fallthru
      _
  $region6: #{fgsbir_fused_forward.2} parent=0 // loop_footer
    %s14 = sadd.s32 1, %s10
  $region7: #{fgsbir_fused_forward.2} parent=0 // loop_footer_branch
    %9 = sbr.rel target = $region3
  $region8: #{fgsbir_fused_forward.2} parent=0 // loop_exit
    _

</llo_original>
